<compile_context>
chip_gen: v7x
topology: tpu7x:2x2x1
jax: 0.10.0
libtpu: 0.0.40
codegen_flags: <defaults>
</compile_context>

<pallas_src>
import functools
import math

import jax
import jax.numpy as jnp
from jax.experimental import pallas as pl
from jax.experimental.pallas import tpu as pltpu


def _round_up(x, m):
    return (x + m - 1) // m * m


def _vmem_config():
    """Per-generation (VMEM tile budget, scoped VMEM limit, max M tile)."""
    try:
        cap = pltpu.get_tpu_info().vmem_capacity_bytes
    except Exception:
        cap = 64 * 1024 * 1024          # assume the smallest (v7x) if unknown
    if cap >= 96 * 1024 * 1024:         # v5e / v6e: 128 MiB physical VMEM
        return 88 * 2**20, 104 * 2**20, 2048
    return 36 * 2**20, 48 * 2**20, 1024  # v7x: 64 MiB physical VMEM


_VMEM_BUDGET, _VMEM_LIMIT, _MAX_TM = _vmem_config()


# ----------------------------------------------------------------------------
# Pallas kernels
# ----------------------------------------------------------------------------
def _fused_conv_gdn_diag_kernel(p_ref, w_ref, vec_ref, o_ref):
    # conv as matmul on the MXU (bf16 inputs, f32 accumulation)
    y = jnp.dot(p_ref[...], w_ref[...], preferred_element_type=jnp.float32)
    y = y + vec_ref[0:1, :]                                  # bias
    # diagonal GDN on the VPU: norm_c = beta_c + gamma_cc * y_c^2
    norm = vec_ref[2:3, :] + vec_ref[1:2, :] * (y * y)
    o_ref[...] = (y * jax.lax.rsqrt(norm)).astype(o_ref.dtype)


def _fused_conv_gdn_dense_kernel(p_ref, w_ref, vec_ref, g_ref, o_ref):
    # fallback for non-diagonal (trained) gamma; g_ref holds gamma^T in bf16
    y = jnp.dot(p_ref[...], w_ref[...], preferred_element_type=jnp.float32)
    y = y + vec_ref[0:1, :]
    norm = jnp.dot((y * y).astype(jnp.bfloat16), g_ref[...],
                   preferred_element_type=jnp.float32) + vec_ref[2:3, :]
    o_ref[...] = (y * jax.lax.rsqrt(norm)).astype(o_ref.dtype)


def _conv_kernel(p_ref, w_ref, o_ref):
    # bias-free conv as matmul (Bconv3, final layer -> f32 output)
    o_ref[...] = jnp.dot(p_ref[...], w_ref[...],
                         preferred_element_type=jnp.float32).astype(o_ref.dtype)


# ----------------------------------------------------------------------------
# Tiling heuristics
# ----------------------------------------------------------------------------
def _pick_tile_m(m, kp, cp, dense_gamma=False):
    """Largest M-tile (multiple of 16) whose footprint fits the VMEM budget."""
    def footprint(t):
        # Conservative: assume 2 buffers for EVERY operand, including the
        # constant-index weights / vectors / dense gamma (v7x safety).
        f = (2 * t * kp * 2          # patches, bf16
             + 2 * t * cp * 4        # output block (counted as f32)
             + 2 * kp * cp * 2       # weights, bf16
             + 2 * 8 * cp * 4)       # stacked bias/gamma/beta, f32
        if dense_gamma:
            f += 2 * cp * cp * 2     # dense gamma^T, bf16
        return f

    tm = min(_MAX_TM, _round_up(m, 16))
    while tm > 16 and footprint(tm) > _VMEM_BUDGET:
        tm = _round_up(tm // 2, 16)
    # Megacore: make large-M layers yield >= 4 grid programs so
    # dimension_semantics=("parallel",) splits rows across v7x's two TCs.
    # Only when M is large enough that the added row padding stays small.
    if m >= 512:
        tm = min(tm, max(16, _round_up(pl.cdiv(m, 4), 16)))
    return tm


# ----------------------------------------------------------------------------
# pallas_call wrappers (tiled over M)
# ----------------------------------------------------------------------------
def fused_conv_gdn(patches, w, vecs, gamma_dense, *, tm, dense_gamma=False):
    mp, kp = patches.shape
    cp = w.shape[1]
    in_specs = [
        pl.BlockSpec((tm, kp), lambda i: (i, 0)),
        pl.BlockSpec((kp, cp), lambda i: (0, 0)),
        pl.BlockSpec((8, cp), lambda i: (0, 0)),
    ]
    if dense_gamma:
        kernel = _fused_conv_gdn_dense_kernel
        in_specs = in_specs + [pl.BlockSpec((cp, cp), lambda i: (0, 0))]
        operands = (patches, w, vecs, gamma_dense)
        gdn_flops = 2 * mp * cp * cp
        extra_bytes = cp * cp * 2
    else:
        kernel = _fused_conv_gdn_diag_kernel
        operands = (patches, w, vecs)
        gdn_flops = 3 * mp * cp
        extra_bytes = 0
    return pl.pallas_call(
        kernel,
        out_shape=jax.ShapeDtypeStruct((mp, cp), jnp.bfloat16),
        grid=(mp // tm,),
        in_specs=in_specs,
        out_specs=pl.BlockSpec((tm, cp), lambda i: (i, 0)),
        compiler_params=pltpu.CompilerParams(
            dimension_semantics=("parallel",),
            vmem_limit_bytes=_VMEM_LIMIT),
        cost_estimate=pl.CostEstimate(
            flops=2 * mp * kp * cp + gdn_flops,
            transcendentals=mp * cp,
            bytes_accessed=(mp * kp * 2 + kp * cp * 2 + 8 * cp * 4
                            + extra_bytes + mp * cp * 2)),
    )(*operands)


def conv_matmul(patches, w, *, tm):
    mp, kp = patches.shape
    cp = w.shape[1]
    return pl.pallas_call(
        _conv_kernel,
        out_shape=jax.ShapeDtypeStruct((mp, cp), jnp.float32),
        grid=(mp // tm,),
        in_specs=[
            pl.BlockSpec((tm, kp), lambda i: (i, 0)),
            pl.BlockSpec((kp, cp), lambda i: (0, 0)),
        ],
        out_specs=pl.BlockSpec((tm, cp), lambda i: (i, 0)),
        compiler_params=pltpu.CompilerParams(
            dimension_semantics=("parallel",),
            vmem_limit_bytes=_VMEM_LIMIT),
        cost_estimate=pl.CostEstimate(
            flops=2 * mp * kp * cp,
            transcendentals=0,
            bytes_accessed=mp * kp * 2 + kp * cp * 2 + mp * cp * 4),
    )(patches, w)


# ----------------------------------------------------------------------------
# Plain-JAX glue: im2col (bf16, tap-major), padding, params, forward
# ----------------------------------------------------------------------------
def im2col(x_nhwc, k, stride, pad):
    """k^2-tap patch extraction. Runs in bf16 (input is already bf16) and
    stacks taps on a new axis so each copied slab stays channel-contiguous."""
    B, H, W, C = x_nhwc.shape
    xp = jnp.pad(x_nhwc, ((0, 0), (pad, pad), (pad, pad), (0, 0)))
    Ho = (H + 2 * pad - k) // stride + 1
    Wo = (W + 2 * pad - k) // stride + 1
    taps = [xp[:, di:di + stride * Ho:stride, dj:dj + stride * Wo:stride, :]
            for di in range(k) for dj in range(k)]
    p = jnp.stack(taps, axis=3)               # (B, Ho, Wo, k*k, C)
    # flattened minor ordering is (kh, kw, cin) -> matches HWIO weight packing
    return p.reshape(B * Ho * Wo, k * k * C), Ho, Wo


def _prep_patches(x_nhwc, k, stride, pad, kp, cp, dense_gamma=False):
    """im2col (bf16) -> pad M/K to tile multiples for lane-dense MXU tiles."""
    p, Ho, Wo = im2col(x_nhwc, k, stride, pad)
    M, K = p.shape
    tm = _pick_tile_m(M, kp, cp, dense_gamma)
    Mp = _round_up(M, tm)
    p = jnp.pad(p, ((0, Mp - M), (0, kp - K)))
    return p, M, Ho, Wo, tm


def _conv_gdn_block(x_nhwc, w, vecs, gdense, k, stride, pad, n_out, dense_gamma):
    B = x_nhwc.shape[0]
    kp, cp = w.shape
    p, M, Ho, Wo, tm = _prep_patches(x_nhwc, k, stride, pad, kp, cp, dense_gamma)
    y = fused_conv_gdn(p, w, vecs, gdense, tm=tm, dense_gamma=dense_gamma)
    # drop M/Cout padding before the next layer's im2col (keeps its K small)
    return y[:M, :n_out].reshape(B, Ho, Wo, n_out)


def _conv_block(x_nhwc, w, k, stride, pad, n_out):
    B = x_nhwc.shape[0]
    kp, cp = w.shape
    p, M, Ho, Wo, tm = _prep_patches(x_nhwc, k, stride, pad, kp, cp)
    y = conv_matmul(p, w, tm=tm)
    return y[:M, :n_out].reshape(B, Ho, Wo, n_out)


def _xavier_normal_oihw(key, shape_oihw, gain):
    cout, cin, kh, kw = shape_oihw
    fan_in, fan_out = cin * kh * kw, cout * kh * kw
    std = gain * math.sqrt(2.0 / (fan_in + fan_out))
    return jax.random.normal(key, shape_oihw, jnp.float32) * std


def _oihw_to_matmul(w_oihw):
    cout, cin, kh, kw = w_oihw.shape
    # OIHW -> HWIO -> (Kh*Kw*Cin, Cout), consistent with im2col tap ordering
    return jnp.transpose(w_oihw, (2, 3, 1, 0)).reshape(kh * kw * cin, cout)


def init_params(key, out_channel_N=32):
    N = out_channel_N
    Cp = _round_up(N, 128)
    k1, k2, k3 = jax.random.split(key, 3)
    w1_oihw = _xavier_normal_oihw(k1, (N, 3, 9, 9), math.sqrt(2 * (3 + N) / 6))
    w2_oihw = _xavier_normal_oihw(k2, (N, N, 5, 5), math.sqrt(2))
    w3_oihw = _xavier_normal_oihw(k3, (N, N, 5, 5), math.sqrt(2))

    def pack(w_oihw):
        w = _oihw_to_matmul(w_oihw)                   # (K, N) f32
        K = w.shape[0]
        Kp = _round_up(K, 128)
        # zero-pad K and Cout: padded output lanes compute to exactly 0
        return jnp.pad(w, ((0, Kp - K), (0, Cp - N))).astype(jnp.bfloat16)

    # Stacked per-channel vectors, single (8, Cp) f32 operand:
    #   row 0: conv bias   (0.01 real lanes, 0 in pad lanes  -> y_pad == 0)
    #   row 1: GDN gamma_d (0.1  real lanes, 0 in pad lanes)
    #   row 2: GDN beta    (1 EVERYWHERE, incl. pad lanes, so rsqrt(norm)
    #                       never sees 0 on padded output lanes)
    #   rows 3..7: zeros (sublane alignment only)
    vec = jnp.zeros((8, Cp), jnp.float32)
    vec = vec.at[0, :N].set(0.01)
    vec = vec.at[1, :N].set(0.1)
    vec = vec.at[2, :].set(1.0)
    assert float(vec[2].min()) == 1.0, "beta pad-lane invariant violated"

    # dense-gamma fallback (gamma^T, symmetric at init), bf16 for the MXU
    gdense = jnp.pad(0.1 * jnp.eye(N, dtype=jnp.float32),
                     ((0, Cp - N), (0, Cp - N))).astype(jnp.bfloat16)

    return {
        "w1": pack(w1_oihw),   # Bconv2/Bconv3 weights == conv2/conv3 at init
        "w2": pack(w2_oihw),
        "w3": pack(w3_oihw),
        "vec1": vec, "vec2": vec,
        "g1_dense": gdense, "g2_dense": gdense,
        # OIHW originals kept for the pure-JAX reference check only
        "_w1_oihw": w1_oihw, "_w2_oihw": w2_oihw, "_w3_oihw": w3_oihw,
    }


@functools.partial(jax.jit, static_argnames=("n_out", "use_dense_gamma"))
def binary_output_encoder_forward(x_nchw, params, n_out, use_dense_gamma=False):
    # NCHW -> NHWC, cast ONCE to bf16: all patch building and inter-layer
    # activation traffic is half-width from here on.
    x = jnp.transpose(x_nchw, (0, 2, 3, 1)).astype(jnp.bfloat16)

    # conv1 (k=9, s=4, p=4) + GDN1  -- fused Pallas kernel
    x = _conv_gdn_block(x, params["w1"], params["vec1"], params["g1_dense"],
                        9, 4, 4, n_out, use_dense_gamma)
    # Bconv2 (k=5, s=2, p=2) + GDN2 -- fused Pallas kernel
    x = _conv_gdn_block(x, params["w2"], params["vec2"], params["g2_dense"],
                        5, 2, 2, n_out, use_dense_gamma)
    # Bconv3 (k=5, s=2, p=2), no bias, no GDN -- Pallas matmul kernel (f32 out)
    x = _conv_block(x, params["w3"], 5, 2, 2, n_out)

    return jnp.transpose(x, (0, 3, 1, 2)).astype(jnp.float32)   # back to NCHW


# ----------------------------------------------------------------------------
# Pure-JAX reference (correctness validation only)
# ----------------------------------------------------------------------------
def _ref_conv(x_nchw, w_oihw, bias, stride, pad):
    y = jax.lax.conv_general_dilated(
        x_nchw, w_oihw, window_strides=(stride, stride),
        padding=[(pad, pad), (pad, pad)],
        dimension_numbers=("NCHW", "OIHW", "NCHW"))
    if bias is not None:
        y = y + bias.reshape(1, -1, 1, 1)
    return y


def _ref_gdn(x_nchw, gamma, beta):
    x2 = x_nchw * x_nchw
    norm = jnp.einsum("oc,bchw->bohw", gamma, x2) + beta.reshape(1, -1, 1, 1)
    return x_nchw * jax.lax.rsqrt(norm)


def ref_forward(x_nchw, params, N):
    b = jnp.full((N,), 0.01, jnp.float32)
    gamma = 0.1 * jnp.eye(N, dtype=jnp.float32)
    beta = jnp.ones((N,), jnp.float32)
    x = _ref_gdn(_ref_conv(x_nchw, params["_w1_oihw"], b, 4, 4), gamma, beta)
    x = _ref_gdn(_ref_conv(x, params["_w2_oihw"], b, 2, 2), gamma, beta)
    x = _ref_conv(x, params["_w3_oihw"], None, 2, 2)
    return x


# ----------------------------------------------------------------------------
if __name__ == "__main__":
    N = 32                       # out_channel_N (module default is 192)
    B, Cin, H, W = 2, 3, 16, 16

    key = jax.random.PRNGKey(0)
    k_x, k_p = jax.random.split(key)
    x = jax.random.normal(k_x, (B, Cin, H, W), jnp.float32)
    params = init_params(k_p, out_channel_N=N)

    out = jax.block_until_ready(binary_output_encoder_forward(x, params, n_out=N))
    # spatial: conv1 16->4, conv2 4->2, conv3 2->1
    assert out.shape == (B, N, 1, 1), out.shape

    ref = jax.block_until_ready(ref_forward(x, params, N))
    scale = float(jnp.max(jnp.abs(ref)))
    err = float(jnp.max(jnp.abs(out - ref)))
    # bf16 MXU inputs / bf16 inter-layer activations with f32 accumulation
    assert err < 0.05 * scale + 1e-3, (err, scale)

    # dense-gamma fallback path (for trained / non-diagonal gamma)
    out_d = jax.block_until_ready(
        binary_output_encoder_forward(x, params, n_out=N, use_dense_gamma=True))
    err_d = float(jnp.max(jnp.abs(out_d - ref)))
    assert err_d < 0.05 * scale + 1e-3, (err_d, scale)

    print("KERNEL_OK")
</pallas_src>

<mosaic_0001>
module attributes {stable_mosaic.version = 11 : i64} {
  func.func @_fused_conv_gdn_diag_kernel(%arg0: i32, %arg1: memref<32x256xbf16, #tpu.memory_space<vmem>>, %arg2: memref<256x128xbf16, #tpu.memory_space<vmem>>, %arg3: memref<8x128xf32, #tpu.memory_space<vmem>>, %arg4: memref<32x128xbf16, #tpu.memory_space<vmem>>) attributes {dimension_semantics = [#tpu.dimension_semantics<parallel>], iteration_bounds = array<i64: 1>, scalar_prefetch = 0 : i64, scratch_operands = 0 : i64, tpu.core_type = #tpu.core_type<tc>, window_params = [{transform_indices = @transform_0, window_bounds = array<i64: 32, 256>}, {pipeline_mode = #tpu.pipeline_mode<synchronous>, transform_indices = @transform_1, window_bounds = array<i64: 256, 128>}, {pipeline_mode = #tpu.pipeline_mode<synchronous>, transform_indices = @transform_2, window_bounds = array<i64: 8, 128>}, {transform_indices = @transform_3, window_bounds = array<i64: 32, 128>}]} {
    %c0 = arith.constant 0 : index
    %c0_0 = arith.constant 0 : index
    %0 = vector.load %arg1[%c0, %c0_0] : memref<32x256xbf16, #tpu.memory_space<vmem>>, vector<32x256xbf16>
    %c0_1 = arith.constant 0 : index
    %c0_2 = arith.constant 0 : index
    %1 = vector.load %arg2[%c0_1, %c0_2] : memref<256x128xbf16, #tpu.memory_space<vmem>>, vector<256x128xbf16>
    %cst = arith.constant dense<0.000000e+00> : vector<32x128xf32>
    %2 = tpu.matmul %0, %1, %cst {dimension_numbers = #tpu.dot_dimension_numbers<[1], [0], [0], [1], [0, 0, 1, 1], [], []>} : vector<32x256xbf16>, vector<256x128xbf16>, vector<32x128xf32> -> vector<32x128xf32>
    %c0_3 = arith.constant 0 : index
    %c0_4 = arith.constant 0 : index
    %3 = vector.load %arg3[%c0_3, %c0_4] : memref<8x128xf32, #tpu.memory_space<vmem>>, vector<1x128xf32>
    %4 = vector.broadcast %3 : vector<1x128xf32> to vector<32x128xf32>
    %5 = arith.addf %2, %4 : vector<32x128xf32>
    %c2 = arith.constant 2 : index
    %c0_5 = arith.constant 0 : index
    %6 = vector.load %arg3[%c2, %c0_5] : memref<8x128xf32, #tpu.memory_space<vmem>>, vector<1x128xf32>
    %c1 = arith.constant 1 : index
    %c0_6 = arith.constant 0 : index
    %7 = vector.load %arg3[%c1, %c0_6] : memref<8x128xf32, #tpu.memory_space<vmem>>, vector<1x128xf32>
    %8 = arith.mulf %5, %5 : vector<32x128xf32>
    %9 = vector.broadcast %7 : vector<1x128xf32> to vector<32x128xf32>
    %10 = arith.mulf %9, %8 : vector<32x128xf32>
    %11 = vector.broadcast %6 : vector<1x128xf32> to vector<32x128xf32>
    %12 = arith.addf %11, %10 : vector<32x128xf32>
    %13 = math.rsqrt %12 : vector<32x128xf32>
    %14 = arith.mulf %5, %13 : vector<32x128xf32>
    %15 = arith.truncf %14 : vector<32x128xf32> to vector<32x128xbf16>
    %c0_7 = arith.constant 0 : index
    %c0_8 = arith.constant 0 : index
    %16 = vector.load %arg4[%c0_7, %c0_8] : memref<32x128xbf16, #tpu.memory_space<vmem>>, vector<32x128xbf16>
    tpu.vector_store %arg4[%c0_7, %c0_8], %15 {strides = array<i32>} : memref<32x128xbf16, #tpu.memory_space<vmem>>, vector<32x128xbf16>,
    return
  }
  func.func @transform_0(%arg0: i32) -> (i32, i32) {
    %c0_i32 = arith.constant 0 : i32
    %c0_i32_0 = arith.constant 0 : i32
    return %arg0, %c0_i32 : i32, i32
  }
  func.func @transform_1(%arg0: i32) -> (i32, i32) {
    %c0_i32 = arith.constant 0 : i32
    %c0_i32_0 = arith.constant 0 : i32
    %c0_i32_1 = arith.constant 0 : i32
    return %c0_i32, %c0_i32_0 : i32, i32
  }
  func.func @transform_2(%arg0: i32) -> (i32, i32) {
    %c0_i32 = arith.constant 0 : i32
    %c0_i32_0 = arith.constant 0 : i32
    %c0_i32_1 = arith.constant 0 : i32
    return %c0_i32, %c0_i32_0 : i32, i32
  }
  func.func @transform_3(%arg0: i32) -> (i32, i32) {
    %c0_i32 = arith.constant 0 : i32
    %c0_i32_0 = arith.constant 0 : i32
    return %arg0, %c0_i32 : i32, i32
  }
}

module attributes {stable_mosaic.version = 11 : i64} {
  func.func @_fused_conv_gdn_diag_kernel(%arg0: i32, %arg1: memref<16x896xbf16, #tpu.memory_space<vmem>>, %arg2: memref<896x128xbf16, #tpu.memory_space<vmem>>, %arg3: memref<8x128xf32, #tpu.memory_space<vmem>>, %arg4: memref<16x128xbf16, #tpu.memory_space<vmem>>) attributes {dimension_semantics = [#tpu.dimension_semantics<parallel>], iteration_bounds = array<i64: 1>, scalar_prefetch = 0 : i64, scratch_operands = 0 : i64, tpu.core_type = #tpu.core_type<tc>, window_params = [{transform_indices = @transform_0, window_bounds = array<i64: 16, 896>}, {pipeline_mode = #tpu.pipeline_mode<synchronous>, transform_indices = @transform_1, window_bounds = array<i64: 896, 128>}, {pipeline_mode = #tpu.pipeline_mode<synchronous>, transform_indices = @transform_2, window_bounds = array<i64: 8, 128>}, {transform_indices = @transform_3, window_bounds = array<i64: 16, 128>}]} {
    %c0 = arith.constant 0 : index
    %c0_0 = arith.constant 0 : index
    %0 = vector.load %arg1[%c0, %c0_0] : memref<16x896xbf16, #tpu.memory_space<vmem>>, vector<16x896xbf16>
    %c0_1 = arith.constant 0 : index
    %c0_2 = arith.constant 0 : index
    %1 = vector.load %arg2[%c0_1, %c0_2] : memref<896x128xbf16, #tpu.memory_space<vmem>>, vector<896x128xbf16>
    %cst = arith.constant dense<0.000000e+00> : vector<16x128xf32>
    %2 = tpu.matmul %0, %1, %cst {dimension_numbers = #tpu.dot_dimension_numbers<[1], [0], [0], [1], [0, 0, 1, 1], [], []>} : vector<16x896xbf16>, vector<896x128xbf16>, vector<16x128xf32> -> vector<16x128xf32>
    %c0_3 = arith.constant 0 : index
    %c0_4 = arith.constant 0 : index
    %3 = vector.load %arg3[%c0_3, %c0_4] : memref<8x128xf32, #tpu.memory_space<vmem>>, vector<1x128xf32>
    %4 = vector.broadcast %3 : vector<1x128xf32> to vector<16x128xf32>
    %5 = arith.addf %2, %4 : vector<16x128xf32>
    %c2 = arith.constant 2 : index
    %c0_5 = arith.constant 0 : index
    %6 = vector.load %arg3[%c2, %c0_5] : memref<8x128xf32, #tpu.memory_space<vmem>>, vector<1x128xf32>
    %c1 = arith.constant 1 : index
    %c0_6 = arith.constant 0 : index
    %7 = vector.load %arg3[%c1, %c0_6] : memref<8x128xf32, #tpu.memory_space<vmem>>, vector<1x128xf32>
    %8 = arith.mulf %5, %5 : vector<16x128xf32>
    %9 = vector.broadcast %7 : vector<1x128xf32> to vector<16x128xf32>
    %10 = arith.mulf %9, %8 : vector<16x128xf32>
    %11 = vector.broadcast %6 : vector<1x128xf32> to vector<16x128xf32>
    %12 = arith.addf %11, %10 : vector<16x128xf32>
    %13 = math.rsqrt %12 : vector<16x128xf32>
    %14 = arith.mulf %5, %13 : vector<16x128xf32>
    %15 = arith.truncf %14 : vector<16x128xf32> to vector<16x128xbf16>
    %c0_7 = arith.constant 0 : index
    %c0_8 = arith.constant 0 : index
    %16 = vector.load %arg4[%c0_7, %c0_8] : memref<16x128xbf16, #tpu.memory_space<vmem>>, vector<16x128xbf16>
    tpu.vector_store %arg4[%c0_7, %c0_8], %15 {strides = array<i32>} : memref<16x128xbf16, #tpu.memory_space<vmem>>, vector<16x128xbf16>,
    return
  }
  func.func @transform_0(%arg0: i32) -> (i32, i32) {
    %c0_i32 = arith.constant 0 : i32
    %c0_i32_0 = arith.constant 0 : i32
    return %arg0, %c0_i32 : i32, i32
  }
  func.func @transform_1(%arg0: i32) -> (i32, i32) {
    %c0_i32 = arith.constant 0 : i32
    %c0_i32_0 = arith.constant 0 : i32
    %c0_i32_1 = arith.constant 0 : i32
    return %c0_i32, %c0_i32_0 : i32, i32
  }
  func.func @transform_2(%arg0: i32) -> (i32, i32) {
    %c0_i32 = arith.constant 0 : i32
    %c0_i32_0 = arith.constant 0 : i32
    %c0_i32_1 = arith.constant 0 : i32
    return %c0_i32, %c0_i32_0 : i32, i32
  }
  func.func @transform_3(%arg0: i32) -> (i32, i32) {
    %c0_i32 = arith.constant 0 : i32
    %c0_i32_0 = arith.constant 0 : i32
    return %arg0, %c0_i32 : i32, i32
  }
}

module attributes {stable_mosaic.version = 11 : i64} {
  func.func @_conv_kernel(%arg0: i32, %arg1: memref<16x896xbf16, #tpu.memory_space<vmem>>, %arg2: memref<896x128xbf16, #tpu.memory_space<vmem>>, %arg3: memref<16x128xf32, #tpu.memory_space<vmem>>) attributes {dimension_semantics = [#tpu.dimension_semantics<parallel>], iteration_bounds = array<i64: 1>, scalar_prefetch = 0 : i64, scratch_operands = 0 : i64, tpu.core_type = #tpu.core_type<tc>, window_params = [{transform_indices = @transform_0, window_bounds = array<i64: 16, 896>}, {pipeline_mode = #tpu.pipeline_mode<synchronous>, transform_indices = @transform_1, window_bounds = array<i64: 896, 128>}, {transform_indices = @transform_2, window_bounds = array<i64: 16, 128>}]} {
    %c0 = arith.constant 0 : index
    %c0_0 = arith.constant 0 : index
    %0 = vector.load %arg1[%c0, %c0_0] : memref<16x896xbf16, #tpu.memory_space<vmem>>, vector<16x896xbf16>
    %c0_1 = arith.constant 0 : index
    %c0_2 = arith.constant 0 : index
    %1 = vector.load %arg2[%c0_1, %c0_2] : memref<896x128xbf16, #tpu.memory_space<vmem>>, vector<896x128xbf16>
    %cst = arith.constant dense<0.000000e+00> : vector<16x128xf32>
    %2 = tpu.matmul %0, %1, %cst {dimension_numbers = #tpu.dot_dimension_numbers<[1], [0], [0], [1], [0, 0, 1, 1], [], []>} : vector<16x896xbf16>, vector<896x128xbf16>, vector<16x128xf32> -> vector<16x128xf32>
    %c0_3 = arith.constant 0 : index
    %c0_4 = arith.constant 0 : index
    %3 = vector.load %arg3[%c0_3, %c0_4] : memref<16x128xf32, #tpu.memory_space<vmem>>, vector<16x128xf32>
    tpu.vector_store %arg3[%c0_3, %c0_4], %2 {strides = array<i32>} : memref<16x128xf32, #tpu.memory_space<vmem>>, vector<16x128xf32>,
    return
  }
  func.func @transform_0(%arg0: i32) -> (i32, i32) {
    %c0_i32 = arith.constant 0 : i32
    %c0_i32_0 = arith.constant 0 : i32
    return %arg0, %c0_i32 : i32, i32
  }
  func.func @transform_1(%arg0: i32) -> (i32, i32) {
    %c0_i32 = arith.constant 0 : i32
    %c0_i32_0 = arith.constant 0 : i32
    %c0_i32_1 = arith.constant 0 : i32
    return %c0_i32, %c0_i32_0 : i32, i32
  }
  func.func @transform_2(%arg0: i32) -> (i32, i32) {
    %c0_i32 = arith.constant 0 : i32
    %c0_i32_0 = arith.constant 0 : i32
    return %arg0, %c0_i32 : i32, i32
  }
}

</mosaic_0001>

<llo_original>
// kernel: binary_output_encoder_forward.3
$region0: #{binary_output_encoder_forward.3}
  #allocation0 [shape = 'u32[]', space=smem, size = 0x4, offset = 0x4, fixed_abs, tag = 'smem constant byte address 0x4 - core index']
  #allocation1 [shape = 'u32[144,128]{1,0:T(1,128)}', space=vmem, size = 0x12000, scoped, tag = 'internal scratch']
  %s0 = inlined_call_operand.vmem [shape: bf16[32,256], index: 0, kind: input, shape index: {}]
  %s1 = inlined_call_operand.vmem [shape: bf16[256,128], index: 1, kind: input, shape index: {}]
  %s2 = inlined_call_operand.vmem [shape: f32[8,128], index: 2, kind: input, shape index: {}]
  %s3 = inlined_call_operand.vmem [shape: bf16[32,128], index: 3, kind: output, shape index: {}]
  %s4 = sld [smem:[#allocation0]]
  $region22: #{binary_output_encoder_forward.3} parent=0
    _
  %s6 = ssub.s32 1, %s4
  %s7 = scalar_select 0, %s6, %s4
  // Predicated region
  $region2: #{binary_output_encoder_forward.3} parent=0 // pred_check
    _
  $region3: #{binary_output_encoder_forward.3} parent=0 // pred_check_branch
    %9 = sbr.rel (0) target = $region5
  $region4: #{binary_output_encoder_forward.3} parent=0 // pred_region
    _
  $region5: #{binary_output_encoder_forward.3} parent=0 // pred_fallthru
    _
  // Predicated region
  $region6: #{binary_output_encoder_forward.3} parent=0 // pred_check
    _
  $region7: #{binary_output_encoder_forward.3} parent=0 // pred_check_branch
    %11 = sbr.rel (0) target = $region9
  $region8: #{binary_output_encoder_forward.3} parent=0 // pred_region
    _
  $region9: #{binary_output_encoder_forward.3} parent=0 // pred_fallthru
    _
  // Predicated region
  $region10: #{binary_output_encoder_forward.3} parent=0 // pred_check
    _
  $region11: #{binary_output_encoder_forward.3} parent=0 // pred_check_branch
    %13 = sbr.rel (0) target = $region13
  $region12: #{binary_output_encoder_forward.3} parent=0 // pred_region
    _
  $region13: #{binary_output_encoder_forward.3} parent=0 // pred_fallthru
    _
  %v15 = vld [vmem:[%s0] sm:$0xff]
  %v16 = vld [vmem:[%s0 + $0x8] sm:$0xff]
  %v17 = vld [vmem:[%s0 + $0x10] sm:$0xff]
  %v18 = vld [vmem:[%s0 + $0x18] sm:$0xff]
  %v19 = vld [vmem:[%s1] sm:$0xf]
  %v20 = vld [vmem:[%s1 + $0x4] sm:$0xf]
  %v21 = vld [vmem:[%s1 + $0x8] sm:$0xf]
  %v22 = vld [vmem:[%s1 + $0xc] sm:$0xf]
  %v23 = vld [vmem:[%s1 + $0x10] sm:$0xf]
  %v24 = vld [vmem:[%s1 + $0x14] sm:$0xf]
  %v25 = vld [vmem:[%s1 + $0x18] sm:$0xf]
  %v26 = vld [vmem:[%s1 + $0x1c] sm:$0xf]
  %v27 = vld [vmem:[%s1 + $0x20] sm:$0xf]
  %v28 = vld [vmem:[%s1 + $0x24] sm:$0xf]
  %v29 = vld [vmem:[%s1 + $0x28] sm:$0xf]
  %v30 = vld [vmem:[%s1 + $0x2c] sm:$0xf]
  %v31 = vld [vmem:[%s1 + $0x30] sm:$0xf]
  %v32 = vld [vmem:[%s1 + $0x34] sm:$0xf]
  %v33 = vld [vmem:[%s1 + $0x38] sm:$0xf]
  %v34 = vld [vmem:[%s1 + $0x3c] sm:$0xf]
  %v35 = vld [vmem:[%s1 + $0x40] sm:$0xf]
  %v36 = vld [vmem:[%s1 + $0x44] sm:$0xf]
  %v37 = vld [vmem:[%s1 + $0x48] sm:$0xf]
  %v38 = vld [vmem:[%s1 + $0x4c] sm:$0xf]
  %v39 = vld [vmem:[%s1 + $0x50] sm:$0xf]
  %v40 = vld [vmem:[%s1 + $0x54] sm:$0xf]
  %v41 = vld [vmem:[%s1 + $0x58] sm:$0xf]
  %v42 = vld [vmem:[%s1 + $0x5c] sm:$0xf]
  %v43 = vld [vmem:[%s1 + $0x60] sm:$0xf]
  %v44 = vld [vmem:[%s1 + $0x64] sm:$0xf]
  %v45 = vld [vmem:[%s1 + $0x68] sm:$0xf]
  %v46 = vld [vmem:[%s1 + $0x6c] sm:$0xf]
  %v47 = vld [vmem:[%s1 + $0x70] sm:$0xf]
  %v48 = vld [vmem:[%s1 + $0x74] sm:$0xf]
  %v49 = vld [vmem:[%s1 + $0x78] sm:$0xf]
  %v50 = vld [vmem:[%s1 + $0x7c] sm:$0xf]
  %v51 = vld [vmem:[%s2] sm:$0x1]
  %v52 = vlaneseq
  %v53 = vshrl.u32 %v52, 7
  %v54 = vsub.s32 0, %v53
  %v55 = vrot.slane %v51, %v54
  %v60 = vunpack.c.l.b16 %v15
  %v61 = vunpack.c.h.b16 %v15
  %v62 = vunpack.c.l.b16 %v16
  %v63 = vunpack.c.h.b16 %v16
  %v64 = vunpack.c.l.b16 %v17
  %v65 = vunpack.c.h.b16 %v17
  %v66 = vunpack.c.l.b16 %v18
  %v67 = vunpack.c.h.b16 %v18
  %v68 = vpack.c.b16 %v62, %v60
  %v69 = vpack.c.b16 %v63, %v61
  %v70 = vpack.c.b16 %v66, %v64
  %v71 = vpack.c.b16 %v67, %v65
  %v108 = vunpack.c.l.b16 %v19
  %v109 = vunpack.c.l.b16 %v20
  %v110 = vunpack.c.l.b16 %v21
  %v111 = vunpack.c.l.b16 %v22
  %v112 = vunpack.c.l.b16 %v23
  %v113 = vunpack.c.l.b16 %v24
  %v114 = vunpack.c.l.b16 %v25
  %v115 = vunpack.c.l.b16 %v26
  %v116 = vunpack.c.l.b16 %v27
  %v117 = vunpack.c.l.b16 %v28
  %v118 = vunpack.c.l.b16 %v29
  %v119 = vunpack.c.l.b16 %v30
  %v120 = vunpack.c.l.b16 %v31
  %v121 = vunpack.c.l.b16 %v32
  %v122 = vunpack.c.l.b16 %v33
  %v123 = vunpack.c.l.b16 %v34
  %v124 = vunpack.c.l.b16 %v35
  %v125 = vunpack.c.l.b16 %v36
  %v126 = vunpack.c.l.b16 %v37
  %v127 = vunpack.c.l.b16 %v38
  %v128 = vunpack.c.l.b16 %v39
  %v129 = vunpack.c.l.b16 %v40
  %v130 = vunpack.c.l.b16 %v41
  %v131 = vunpack.c.l.b16 %v42
  %v132 = vunpack.c.l.b16 %v43
  %v133 = vunpack.c.l.b16 %v44
  %v134 = vunpack.c.l.b16 %v45
  %v135 = vunpack.c.l.b16 %v46
  %v136 = vunpack.c.l.b16 %v47
  %v137 = vunpack.c.l.b16 %v48
  %v138 = vunpack.c.l.b16 %v49
  %v139 = vunpack.c.l.b16 %v50
  %v140 = vpack.c.b16 %v109, %v108
  %v141 = vpack.c.b16 %v111, %v110
  %v142 = vpack.c.b16 %v113, %v112
  %v143 = vpack.c.b16 %v115, %v114
  %v144 = vpack.c.b16 %v117, %v116
  %v145 = vpack.c.b16 %v119, %v118
  %v146 = vpack.c.b16 %v121, %v120
  %v147 = vpack.c.b16 %v123, %v122
  %v148 = vpack.c.b16 %v125, %v124
  %v149 = vpack.c.b16 %v127, %v126
  %v150 = vpack.c.b16 %v129, %v128
  %v151 = vpack.c.b16 %v131, %v130
  %v152 = vpack.c.b16 %v133, %v132
  %v153 = vpack.c.b16 %v135, %v134
  %v154 = vpack.c.b16 %v137, %v136
  %v155 = vpack.c.b16 %v139, %v138
  %172 = vmatprep.subr.bf16.mxu0 0
  %173 = vmatpush1.bf16.msra.mxu0 %v140
  %174 = vmatprep.subr.bf16.mxu0 0
  %175 = vmatpush1.bf16.msra.mxu0 %v141
  %176 = vmatprep.subr.bf16.mxu0 0
  %177 = vmatpush1.bf16.msra.mxu0 %v142
  %178 = vmatprep.subr.bf16.mxu0 0
  %179 = vmatpush1.bf16.msra.mxu0 %v143
  %180 = vmatprep.subr.bf16.mxu0 0
  %181 = vmatpush1.bf16.msra.mxu0 %v144
  %182 = vmatprep.subr.bf16.mxu0 0
  %183 = vmatpush1.bf16.msra.mxu0 %v145
  %184 = vmatprep.subr.bf16.mxu0 0
  %185 = vmatpush1.bf16.msra.mxu0 %v146
  %186 = vmatprep.subr.bf16.mxu0 0
  %187 = vmatpush1.bf16.msra.mxu0 %v147
  %188 = vmatprep.subr.bf16.mxu0 0
  %189 = vmatpush1.bf16.msra.mxu0 %v148
  %190 = vmatprep.subr.bf16.mxu0 0
  %191 = vmatpush1.bf16.msra.mxu0 %v149
  %192 = vmatprep.subr.bf16.mxu0 0
  %193 = vmatpush1.bf16.msra.mxu0 %v150
  %194 = vmatprep.subr.bf16.mxu0 0
  %195 = vmatpush1.bf16.msra.mxu0 %v151
  %196 = vmatprep.subr.bf16.mxu0 0
  %197 = vmatpush1.bf16.msra.mxu0 %v152
  %198 = vmatprep.subr.bf16.mxu0 0
  %199 = vmatpush1.bf16.msra.mxu0 %v153
  %200 = vmatprep.subr.bf16.mxu0 0
  %201 = vmatpush1.bf16.msra.mxu0 %v154
  %202 = vmatprep.subr.bf16.mxu0 0
  %203 = vmatpush1.bf16.msra.mxu0 %v155
  %204 = vmatprep.mubr.bf16.mxu0 %v69
  %205 = vmatmul.mubr.bf16.gmra.mrb[0].mxu0 %v68
  %v206 = vpop.f32.mrb[0].mxu0
  %v207 = vadd.f32 %v55, %v206
  %v208 = vpop.f32.mrb[0].mxu0
  %v209 = vpop.f32.mrb[0].mxu0
  %v210 = vadd.f32 %v55, %v209
  %v211 = vpop.f32.mrb[0].mxu0
  %212 = vmatprep.mubr.bf16.mxu0 %v71
  %213 = vmatmul.mubr.bf16.gmra.mrb[0].mxu0 %v70
  %v214 = vpop.f32.mrb[0].mxu0
  %v215 = vadd.f32 %v55, %v214
  %v216 = vpop.f32.mrb[0].mxu0
  %v217 = vpop.f32.mrb[0].mxu0
  %v218 = vadd.f32 %v55, %v217
  %v219 = vpop.f32.mrb[0].mxu0
  %220 = vdwg.mxu0
  %v221 = vld [vmem:[%s2 + $0x2] sm:$0x1]
  %v222 = vld [vmem:[%s2 + $0x1] sm:$0x1]
  %v223 = vmul.f32 %v207, %v207
  %v224 = vmul.f32 %v210, %v210
  %v225 = vmul.f32 %v215, %v215
  %v226 = vmul.f32 %v218, %v218
  %v227 = vlaneseq
  %v228 = vshrl.u32 %v227, 7
  %v229 = vsub.s32 0, %v228
  %v230 = vrot.slane %v222, %v229
  %v231 = vmul.f32 %v230, %v223
  %v232 = vmul.f32 %v230, %v224
  %v233 = vmul.f32 %v230, %v225
  %v234 = vmul.f32 %v230, %v226
  %v235 = vlaneseq
  %v236 = vshrl.u32 %v235, 7
  %v237 = vsub.s32 0, %v236
  %v238 = vrot.slane %v221, %v237
  %v239 = vadd.f32 %v238, %v231
  %v240 = vadd.f32 %v238, %v232
  %v241 = vadd.f32 %v238, %v233
  %v242 = vadd.f32 %v238, %v234
  %v243 = vrsqrt.pop %v239
  %v244 = vrsqrt.pop %v240
  %v245 = vrsqrt.pop %v241
  %v246 = vrsqrt.pop %v242
  %v247 = vmul.f32 %v207, %v243
  %v248 = vmul.f32 %v210, %v244
  %v249 = vmul.f32 %v215, %v245
  %v250 = vmul.f32 %v218, %v246
  %v251 = vpack.c.bf16 %v248, %v247
  %v252 = vpack.c.bf16 %v250, %v249
  %v255 = vunpack.c.l.b16 %v251
  %v256 = vunpack.c.h.b16 %v251
  %v257 = vunpack.c.l.b16 %v252
  %v258 = vunpack.c.h.b16 %v252
  %v259 = vpack.c.b16 %v255, %v255
  %v260 = vpack.c.b16 %v256, %v256
  %v261 = vpack.c.b16 %v257, %v257
  %v262 = vpack.c.b16 %v258, %v258
  %267 = vst [vmem:[%s3] sm:$0xf] %v259
  %268 = vst [vmem:[%s3 + $0x4] sm:$0xf] %v260
  %269 = vst [vmem:[%s3 + $0x8] sm:$0xf] %v261
  %270 = vst [vmem:[%s3 + $0xc] sm:$0xf] %v262
  // Predicated region
  $region14: #{binary_output_encoder_forward.3} parent=0 // pred_check
    _
  $region15: #{binary_output_encoder_forward.3} parent=0 // pred_check_branch
    %272 = sbr.rel (0) target = $region17
  $region16: #{binary_output_encoder_forward.3} parent=0 // pred_region
    _
  $region17: #{binary_output_encoder_forward.3} parent=0 // pred_fallthru
    _
  // Predicated region
  $region18: #{binary_output_encoder_forward.3} parent=0 // pred_check
    _
  $region19: #{binary_output_encoder_forward.3} parent=0 // pred_check_branch
    %274 = sbr.rel (0) target = $region21
  $region20: #{binary_output_encoder_forward.3} parent=0 // pred_region
    _
  $region21: #{binary_output_encoder_forward.3} parent=0 // pred_fallthru
    _

// kernel: binary_output_encoder_forward.4
$region0: #{binary_output_encoder_forward.4}
  #allocation0 [shape = 'u32[]', space=smem, size = 0x4, offset = 0x4, fixed_abs, tag = 'smem constant byte address 0x4 - core index']
  #allocation1 [shape = 'u32[144,128]{1,0:T(1,128)}', space=vmem, size = 0x12000, scoped, tag = 'internal scratch']
  %s0 = inlined_call_operand.vmem [shape: bf16[16,896], index: 0, kind: input, shape index: {}]
  %s1 = inlined_call_operand.vmem [shape: bf16[896,128], index: 1, kind: input, shape index: {}]
  %s2 = inlined_call_operand.vmem [shape: f32[8,128], index: 2, kind: input, shape index: {}]
  %s3 = inlined_call_operand.vmem [shape: bf16[16,128], index: 3, kind: output, shape index: {}]
  %s4 = sld [smem:[#allocation0]]
  $region22: #{binary_output_encoder_forward.4} parent=0
    _
  %s6 = ssub.s32 1, %s4
  %s7 = scalar_select 0, %s6, %s4
  // Predicated region
  $region2: #{binary_output_encoder_forward.4} parent=0 // pred_check
    _
  $region3: #{binary_output_encoder_forward.4} parent=0 // pred_check_branch
    %9 = sbr.rel (0) target = $region5
  $region4: #{binary_output_encoder_forward.4} parent=0 // pred_region
    _
  $region5: #{binary_output_encoder_forward.4} parent=0 // pred_fallthru
    _
  // Predicated region
  $region6: #{binary_output_encoder_forward.4} parent=0 // pred_check
    _
  $region7: #{binary_output_encoder_forward.4} parent=0 // pred_check_branch
    %11 = sbr.rel (0) target = $region9
  $region8: #{binary_output_encoder_forward.4} parent=0 // pred_region
    _
  $region9: #{binary_output_encoder_forward.4} parent=0 // pred_fallthru
    _
  // Predicated region
  $region10: #{binary_output_encoder_forward.4} parent=0 // pred_check
    _
  $region11: #{binary_output_encoder_forward.4} parent=0 // pred_check_branch
    %13 = sbr.rel (0) target = $region13
  $region12: #{binary_output_encoder_forward.4} parent=0 // pred_region
    _
  $region13: #{binary_output_encoder_forward.4} parent=0 // pred_fallthru
    _
  %v15 = vld [vmem:[%s0] sm:$0xff]
  %v16 = vld [vmem:[%s0 + $0x8] sm:$0xff]
  %v17 = vld [vmem:[%s0 + $0x10] sm:$0xff]
  %v18 = vld [vmem:[%s0 + $0x18] sm:$0xf]
  %v19 = vld [vmem:[%s0 + $0x1c] sm:$0xff]
  %v20 = vld [vmem:[%s0 + $0x24] sm:$0xff]
  %v21 = vld [vmem:[%s0 + $0x2c] sm:$0xff]
  %v22 = vld [vmem:[%s0 + $0x34] sm:$0xf]
  %v23 = vld [vmem:[%s1] sm:$0xf]
  %v24 = vld [vmem:[%s1 + $0x4] sm:$0xf]
  %v25 = vld [vmem:[%s1 + $0x8] sm:$0xf]
  %v26 = vld [vmem:[%s1 + $0xc] sm:$0xf]
  %v27 = vld [vmem:[%s1 + $0x10] sm:$0xf]
  %v28 = vld [vmem:[%s1 + $0x14] sm:$0xf]
  %v29 = vld [vmem:[%s1 + $0x18] sm:$0xf]
  %v30 = vld [vmem:[%s1 + $0x1c] sm:$0xf]
  %v31 = vld [vmem:[%s1 + $0x20] sm:$0xf]
  %v32 = vld [vmem:[%s1 + $0x24] sm:$0xf]
  %v33 = vld [vmem:[%s1 + $0x28] sm:$0xf]
  %v34 = vld [vmem:[%s1 + $0x2c] sm:$0xf]
  %v35 = vld [vmem:[%s1 + $0x30] sm:$0xf]
  %v36 = vld [vmem:[%s1 + $0x34] sm:$0xf]
  %v37 = vld [vmem:[%s1 + $0x38] sm:$0xf]
  %v38 = vld [vmem:[%s1 + $0x3c] sm:$0xf]
  %v39 = vld [vmem:[%s1 + $0x40] sm:$0xf]
  %v40 = vld [vmem:[%s1 + $0x44] sm:$0xf]
  %v41 = vld [vmem:[%s1 + $0x48] sm:$0xf]
  %v42 = vld [vmem:[%s1 + $0x4c] sm:$0xf]
  %v43 = vld [vmem:[%s1 + $0x50] sm:$0xf]
  %v44 = vld [vmem:[%s1 + $0x54] sm:$0xf]
  %v45 = vld [vmem:[%s1 + $0x58] sm:$0xf]
  %v46 = vld [vmem:[%s1 + $0x5c] sm:$0xf]
  %v47 = vld [vmem:[%s1 + $0x60] sm:$0xf]
  %v48 = vld [vmem:[%s1 + $0x64] sm:$0xf]
  %v49 = vld [vmem:[%s1 + $0x68] sm:$0xf]
  %v50 = vld [vmem:[%s1 + $0x6c] sm:$0xf]
  %v51 = vld [vmem:[%s1 + $0x70] sm:$0xf]
  %v52 = vld [vmem:[%s1 + $0x74] sm:$0xf]
  %v53 = vld [vmem:[%s1 + $0x78] sm:$0xf]
  %v54 = vld [vmem:[%s1 + $0x7c] sm:$0xf]
  %v55 = vld [vmem:[%s1 + $0x80] sm:$0xf]
  %v56 = vld [vmem:[%s1 + $0x84] sm:$0xf]
  %v57 = vld [vmem:[%s1 + $0x88] sm:$0xf]
  %v58 = vld [vmem:[%s1 + $0x8c] sm:$0xf]
  %v59 = vld [vmem:[%s1 + $0x90] sm:$0xf]
  %v60 = vld [vmem:[%s1 + $0x94] sm:$0xf]
  %v61 = vld [vmem:[%s1 + $0x98] sm:$0xf]
  %v62 = vld [vmem:[%s1 + $0x9c] sm:$0xf]
  %v63 = vld [vmem:[%s1 + $0xa0] sm:$0xf]
  %v64 = vld [vmem:[%s1 + $0xa4] sm:$0xf]
  %v65 = vld [vmem:[%s1 + $0xa8] sm:$0xf]
  %v66 = vld [vmem:[%s1 + $0xac] sm:$0xf]
  %v67 = vld [vmem:[%s1 + $0xb0] sm:$0xf]
  %v68 = vld [vmem:[%s1 + $0xb4] sm:$0xf]
  %v69 = vld [vmem:[%s1 + $0xb8] sm:$0xf]
  %v70 = vld [vmem:[%s1 + $0xbc] sm:$0xf]
  %v71 = vld [vmem:[%s1 + $0xc0] sm:$0xf]
  %v72 = vld [vmem:[%s1 + $0xc4] sm:$0xf]
  %v73 = vld [vmem:[%s1 + $0xc8] sm:$0xf]
  %v74 = vld [vmem:[%s1 + $0xcc] sm:$0xf]
  %v75 = vld [vmem:[%s1 + $0xd0] sm:$0xf]
  %v76 = vld [vmem:[%s1 + $0xd4] sm:$0xf]
  %v77 = vld [vmem:[%s1 + $0xd8] sm:$0xf]
  %v78 = vld [vmem:[%s1 + $0xdc] sm:$0xf]
  %v79 = vld [vmem:[%s1 + $0xe0] sm:$0xf]
  %v80 = vld [vmem:[%s1 + $0xe4] sm:$0xf]
  %v81 = vld [vmem:[%s1 + $0xe8] sm:$0xf]
  %v82 = vld [vmem:[%s1 + $0xec] sm:$0xf]
  %v83 = vld [vmem:[%s1 + $0xf0] sm:$0xf]
  %v84 = vld [vmem:[%s1 + $0xf4] sm:$0xf]
  %v85 = vld [vmem:[%s1 + $0xf8] sm:$0xf]
  %v86 = vld [vmem:[%s1 + $0xfc] sm:$0xf]
  %v87 = vld [vmem:[%s1 + $0x100] sm:$0xf]
  %v88 = vld [vmem:[%s1 + $0x104] sm:$0xf]
  %v89 = vld [vmem:[%s1 + $0x108] sm:$0xf]
  %v90 = vld [vmem:[%s1 + $0x10c] sm:$0xf]
  %v91 = vld [vmem:[%s1 + $0x110] sm:$0xf]
  %v92 = vld [vmem:[%s1 + $0x114] sm:$0xf]
  %v93 = vld [vmem:[%s1 + $0x118] sm:$0xf]
  %v94 = vld [vmem:[%s1 + $0x11c] sm:$0xf]
  %v95 = vld [vmem:[%s1 + $0x120] sm:$0xf]
  %v96 = vld [vmem:[%s1 + $0x124] sm:$0xf]
  %v97 = vld [vmem:[%s1 + $0x128] sm:$0xf]
  %v98 = vld [vmem:[%s1 + $0x12c] sm:$0xf]
  %v99 = vld [vmem:[%s1 + $0x130] sm:$0xf]
  %v100 = vld [vmem:[%s1 + $0x134] sm:$0xf]
  %v101 = vld [vmem:[%s1 + $0x138] sm:$0xf]
  %v102 = vld [vmem:[%s1 + $0x13c] sm:$0xf]
  %v103 = vld [vmem:[%s1 + $0x140] sm:$0xf]
  %v104 = vld [vmem:[%s1 + $0x144] sm:$0xf]
  %v105 = vld [vmem:[%s1 + $0x148] sm:$0xf]
  %v106 = vld [vmem:[%s1 + $0x14c] sm:$0xf]
  %v107 = vld [vmem:[%s1 + $0x150] sm:$0xf]
  %v108 = vld [vmem:[%s1 + $0x154] sm:$0xf]
  %v109 = vld [vmem:[%s1 + $0x158] sm:$0xf]
  %v110 = vld [vmem:[%s1 + $0x15c] sm:$0xf]
  %v111 = vld [vmem:[%s1 + $0x160] sm:$0xf]
  %v112 = vld [vmem:[%s1 + $0x164] sm:$0xf]
  %v113 = vld [vmem:[%s1 + $0x168] sm:$0xf]
  %v114 = vld [vmem:[%s1 + $0x16c] sm:$0xf]
  %v115 = vld [vmem:[%s1 + $0x170] sm:$0xf]
  %v116 = vld [vmem:[%s1 + $0x174] sm:$0xf]
  %v117 = vld [vmem:[%s1 + $0x178] sm:$0xf]
  %v118 = vld [vmem:[%s1 + $0x17c] sm:$0xf]
  %v119 = vld [vmem:[%s1 + $0x180] sm:$0xf]
  %v120 = vld [vmem:[%s1 + $0x184] sm:$0xf]
  %v121 = vld [vmem:[%s1 + $0x188] sm:$0xf]
  %v122 = vld [vmem:[%s1 + $0x18c] sm:$0xf]
  %v123 = vld [vmem:[%s1 + $0x190] sm:$0xf]
  %v124 = vld [vmem:[%s1 + $0x194] sm:$0xf]
  %v125 = vld [vmem:[%s1 + $0x198] sm:$0xf]
  %v126 = vld [vmem:[%s1 + $0x19c] sm:$0xf]
  %v127 = vld [vmem:[%s1 + $0x1a0] sm:$0xf]
  %v128 = vld [vmem:[%s1 + $0x1a4] sm:$0xf]
  %v129 = vld [vmem:[%s1 + $0x1a8] sm:$0xf]
  %v130 = vld [vmem:[%s1 + $0x1ac] sm:$0xf]
  %v131 = vld [vmem:[%s1 + $0x1b0] sm:$0xf]
  %v132 = vld [vmem:[%s1 + $0x1b4] sm:$0xf]
  %v133 = vld [vmem:[%s1 + $0x1b8] sm:$0xf]
  %v134 = vld [vmem:[%s1 + $0x1bc] sm:$0xf]
  %v135 = vld [vmem:[%s2] sm:$0x1]
  %v136 = vlaneseq
  %v137 = vshrl.u32 %v136, 7
  %v138 = vsub.s32 0, %v137
  %v139 = vrot.slane %v135, %v138
  %v148 = vunpack.c.l.b16 %v15
  %v149 = vunpack.c.h.b16 %v15
  %v150 = vunpack.c.l.b16 %v16
  %v151 = vunpack.c.h.b16 %v16
  %v152 = vunpack.c.l.b16 %v17
  %v153 = vunpack.c.h.b16 %v17
  %v154 = vunpack.c.l.b16 %v18
  %v155 = vunpack.c.l.b16 %v19
  %v156 = vunpack.c.h.b16 %v19
  %v157 = vunpack.c.l.b16 %v20
  %v158 = vunpack.c.h.b16 %v20
  %v159 = vunpack.c.l.b16 %v21
  %v160 = vunpack.c.h.b16 %v21
  %v161 = vunpack.c.l.b16 %v22
  %v162 = vpack.c.b16 %v155, %v148
  %v163 = vpack.c.b16 %v156, %v149
  %v164 = vpack.c.b16 %v157, %v150
  %v165 = vpack.c.b16 %v158, %v151
  %v166 = vpack.c.b16 %v159, %v152
  %v167 = vpack.c.b16 %v160, %v153
  %v168 = vpack.c.b16 %v161, %v154
  %v288 = vunpack.c.l.b16 %v23
  %v289 = vunpack.c.l.b16 %v24
  %v290 = vunpack.c.l.b16 %v25
  %v291 = vunpack.c.l.b16 %v26
  %v292 = vunpack.c.l.b16 %v27
  %v293 = vunpack.c.l.b16 %v28
  %v294 = vunpack.c.l.b16 %v29
  %v295 = vunpack.c.l.b16 %v30
  %v296 = vunpack.c.l.b16 %v31
  %v297 = vunpack.c.l.b16 %v32
  %v298 = vunpack.c.l.b16 %v33
  %v299 = vunpack.c.l.b16 %v34
  %v300 = vunpack.c.l.b16 %v35
  %v301 = vunpack.c.l.b16 %v36
  %v302 = vunpack.c.l.b16 %v37
  %v303 = vunpack.c.l.b16 %v38
  %v304 = vunpack.c.l.b16 %v39
  %v305 = vunpack.c.l.b16 %v40
  %v306 = vunpack.c.l.b16 %v41
  %v307 = vunpack.c.l.b16 %v42
  %v308 = vunpack.c.l.b16 %v43
  %v309 = vunpack.c.l.b16 %v44
  %v310 = vunpack.c.l.b16 %v45
  %v311 = vunpack.c.l.b16 %v46
  %v312 = vunpack.c.l.b16 %v47
  %v313 = vunpack.c.l.b16 %v48
  %v314 = vunpack.c.l.b16 %v49
  %v315 = vunpack.c.l.b16 %v50
  %v316 = vunpack.c.l.b16 %v51
  %v317 = vunpack.c.l.b16 %v52
  %v318 = vunpack.c.l.b16 %v53
  %v319 = vunpack.c.l.b16 %v54
  %v320 = vunpack.c.l.b16 %v55
  %v321 = vunpack.c.l.b16 %v56
  %v322 = vunpack.c.l.b16 %v57
  %v323 = vunpack.c.l.b16 %v58
  %v324 = vunpack.c.l.b16 %v59
  %v325 = vunpack.c.l.b16 %v60
  %v326 = vunpack.c.l.b16 %v61
  %v327 = vunpack.c.l.b16 %v62
  %v328 = vunpack.c.l.b16 %v63
  %v329 = vunpack.c.l.b16 %v64
  %v330 = vunpack.c.l.b16 %v65
  %v331 = vunpack.c.l.b16 %v66
  %v332 = vunpack.c.l.b16 %v67
  %v333 = vunpack.c.l.b16 %v68
  %v334 = vunpack.c.l.b16 %v69
  %v335 = vunpack.c.l.b16 %v70
  %v336 = vunpack.c.l.b16 %v71
  %v337 = vunpack.c.l.b16 %v72
  %v338 = vunpack.c.l.b16 %v73
  %v339 = vunpack.c.l.b16 %v74
  %v340 = vunpack.c.l.b16 %v75
  %v341 = vunpack.c.l.b16 %v76
  %v342 = vunpack.c.l.b16 %v77
  %v343 = vunpack.c.l.b16 %v78
  %v344 = vunpack.c.l.b16 %v79
  %v345 = vunpack.c.l.b16 %v80
  %v346 = vunpack.c.l.b16 %v81
  %v347 = vunpack.c.l.b16 %v82
  %v348 = vunpack.c.l.b16 %v83
  %v349 = vunpack.c.l.b16 %v84
  %v350 = vunpack.c.l.b16 %v85
  %v351 = vunpack.c.l.b16 %v86
  %v352 = vunpack.c.l.b16 %v87
  %v353 = vunpack.c.l.b16 %v88
  %v354 = vunpack.c.l.b16 %v89
  %v355 = vunpack.c.l.b16 %v90
  %v356 = vunpack.c.l.b16 %v91
  %v357 = vunpack.c.l.b16 %v92
  %v358 = vunpack.c.l.b16 %v93
  %v359 = vunpack.c.l.b16 %v94
  %v360 = vunpack.c.l.b16 %v95
  %v361 = vunpack.c.l.b16 %v96
  %v362 = vunpack.c.l.b16 %v97
  %v363 = vunpack.c.l.b16 %v98
  %v364 = vunpack.c.l.b16 %v99
  %v365 = vunpack.c.l.b16 %v100
  %v366 = vunpack.c.l.b16 %v101
  %v367 = vunpack.c.l.b16 %v102
  %v368 = vunpack.c.l.b16 %v103
  %v369 = vunpack.c.l.b16 %v104
  %v370 = vunpack.c.l.b16 %v105
  %v371 = vunpack.c.l.b16 %v106
  %v372 = vunpack.c.l.b16 %v107
  %v373 = vunpack.c.l.b16 %v108
  %v374 = vunpack.c.l.b16 %v109
  %v375 = vunpack.c.l.b16 %v110
  %v376 = vunpack.c.l.b16 %v111
  %v377 = vunpack.c.l.b16 %v112
  %v378 = vunpack.c.l.b16 %v113
  %v379 = vunpack.c.l.b16 %v114
  %v380 = vunpack.c.l.b16 %v115
  %v381 = vunpack.c.l.b16 %v116
  %v382 = vunpack.c.l.b16 %v117
  %v383 = vunpack.c.l.b16 %v118
  %v384 = vunpack.c.l.b16 %v119
  %v385 = vunpack.c.l.b16 %v120
  %v386 = vunpack.c.l.b16 %v121
  %v387 = vunpack.c.l.b16 %v122
  %v388 = vunpack.c.l.b16 %v123
  %v389 = vunpack.c.l.b16 %v124
  %v390 = vunpack.c.l.b16 %v125
  %v391 = vunpack.c.l.b16 %v126
  %v392 = vunpack.c.l.b16 %v127
  %v393 = vunpack.c.l.b16 %v128
  %v394 = vunpack.c.l.b16 %v129
  %v395 = vunpack.c.l.b16 %v130
  %v396 = vunpack.c.l.b16 %v131
  %v397 = vunpack.c.l.b16 %v132
  %v398 = vunpack.c.l.b16 %v133
  %v399 = vunpack.c.l.b16 %v134
  %v400 = vpack.c.b16 %v289, %v288
  %v401 = vpack.c.b16 %v291, %v290
  %v402 = vpack.c.b16 %v293, %v292
  %v403 = vpack.c.b16 %v295, %v294
  %v404 = vpack.c.b16 %v297, %v296
  %v405 = vpack.c.b16 %v299, %v298
  %v406 = vpack.c.b16 %v301, %v300
  %v407 = vpack.c.b16 %v303, %v302
  %v408 = vpack.c.b16 %v305, %v304
  %v409 = vpack.c.b16 %v307, %v306
  %v410 = vpack.c.b16 %v309, %v308
  %v411 = vpack.c.b16 %v311, %v310
  %v412 = vpack.c.b16 %v313, %v312
  %v413 = vpack.c.b16 %v315, %v314
  %v414 = vpack.c.b16 %v317, %v316
  %v415 = vpack.c.b16 %v319, %v318
  %v416 = vpack.c.b16 %v321, %v320
  %v417 = vpack.c.b16 %v323, %v322
  %v418 = vpack.c.b16 %v325, %v324
  %v419 = vpack.c.b16 %v327, %v326
  %v420 = vpack.c.b16 %v329, %v328
  %v421 = vpack.c.b16 %v331, %v330
  %v422 = vpack.c.b16 %v333, %v332
  %v423 = vpack.c.b16 %v335, %v334
  %v424 = vpack.c.b16 %v337, %v336
  %v425 = vpack.c.b16 %v339, %v338
  %v426 = vpack.c.b16 %v341, %v340
  %v427 = vpack.c.b16 %v343, %v342
  %v428 = vpack.c.b16 %v345, %v344
  %v429 = vpack.c.b16 %v347, %v346
  %v430 = vpack.c.b16 %v349, %v348
  %v431 = vpack.c.b16 %v351, %v350
  %v432 = vpack.c.b16 %v353, %v352
  %v433 = vpack.c.b16 %v355, %v354
  %v434 = vpack.c.b16 %v357, %v356
  %v435 = vpack.c.b16 %v359, %v358
  %v436 = vpack.c.b16 %v361, %v360
  %v437 = vpack.c.b16 %v363, %v362
  %v438 = vpack.c.b16 %v365, %v364
  %v439 = vpack.c.b16 %v367, %v366
  %v440 = vpack.c.b16 %v369, %v368
  %v441 = vpack.c.b16 %v371, %v370
  %v442 = vpack.c.b16 %v373, %v372
  %v443 = vpack.c.b16 %v375, %v374
  %v444 = vpack.c.b16 %v377, %v376
  %v445 = vpack.c.b16 %v379, %v378
  %v446 = vpack.c.b16 %v381, %v380
  %v447 = vpack.c.b16 %v383, %v382
  %v448 = vpack.c.b16 %v385, %v384
  %v449 = vpack.c.b16 %v387, %v386
  %v450 = vpack.c.b16 %v389, %v388
  %v451 = vpack.c.b16 %v391, %v390
  %v452 = vpack.c.b16 %v393, %v392
  %v453 = vpack.c.b16 %v395, %v394
  %v454 = vpack.c.b16 %v397, %v396
  %v455 = vpack.c.b16 %v399, %v398
  %512 = vmatprep.subr.bf16.mxu0 0
  %513 = vmatpush1.bf16.msra.mxu0 %v400
  %514 = vmatprep.subr.bf16.mxu0 0
  %515 = vmatpush1.bf16.msra.mxu0 %v401
  %516 = vmatprep.subr.bf16.mxu0 0
  %517 = vmatpush1.bf16.msra.mxu0 %v402
  %518 = vmatprep.subr.bf16.mxu0 0
  %519 = vmatpush1.bf16.msra.mxu0 %v403
  %520 = vmatprep.subr.bf16.mxu0 0
  %521 = vmatpush1.bf16.msra.mxu0 %v404
  %522 = vmatprep.subr.bf16.mxu0 0
  %523 = vmatpush1.bf16.msra.mxu0 %v405
  %524 = vmatprep.subr.bf16.mxu0 0
  %525 = vmatpush1.bf16.msra.mxu0 %v406
  %526 = vmatprep.subr.bf16.mxu0 0
  %527 = vmatpush1.bf16.msra.mxu0 %v407
  %528 = vmatprep.subr.bf16.mxu0 0
  %529 = vmatpush1.bf16.msra.mxu0 %v408
  %530 = vmatprep.subr.bf16.mxu0 0
  %531 = vmatpush1.bf16.msra.mxu0 %v409
  %532 = vmatprep.subr.bf16.mxu0 0
  %533 = vmatpush1.bf16.msra.mxu0 %v410
  %534 = vmatprep.subr.bf16.mxu0 0
  %535 = vmatpush1.bf16.msra.mxu0 %v411
  %536 = vmatprep.subr.bf16.mxu0 0
  %537 = vmatpush1.bf16.msra.mxu0 %v412
  %538 = vmatprep.subr.bf16.mxu0 0
  %539 = vmatpush1.bf16.msra.mxu0 %v413
  %540 = vmatprep.subr.bf16.mxu0 0
  %541 = vmatpush1.bf16.msra.mxu0 %v414
  %542 = vmatprep.subr.bf16.mxu0 0
  %543 = vmatpush1.bf16.msra.mxu0 %v415
  %544 = vmatprep.mubr.bf16.mxu0 %v163
  %545 = vmatmul.mubr.bf16.gmra.mrb[0].mxu0 %v162
  %v546 = vpop.f32.mrb[0].mxu0
  %v547 = vadd.f32 %v139, %v546
  %v548 = vpop.f32.mrb[0].mxu0
  %v549 = vpop.f32.mrb[0].mxu0
  %v550 = vadd.f32 %v139, %v549
  %v551 = vpop.f32.mrb[0].mxu0
  %552 = vdwg.mxu0
  %553 = vmatprep.subr.bf16.mxu0 0
  %554 = vmatpush1.bf16.msra.mxu0 %v416
  %555 = vmatprep.subr.bf16.mxu0 0
  %556 = vmatpush1.bf16.msra.mxu0 %v417
  %557 = vmatprep.subr.bf16.mxu0 0
  %558 = vmatpush1.bf16.msra.mxu0 %v418
  %559 = vmatprep.subr.bf16.mxu0 0
  %560 = vmatpush1.bf16.msra.mxu0 %v419
  %561 = vmatprep.subr.bf16.mxu0 0
  %562 = vmatpush1.bf16.msra.mxu0 %v420
  %563 = vmatprep.subr.bf16.mxu0 0
  %564 = vmatpush1.bf16.msra.mxu0 %v421
  %565 = vmatprep.subr.bf16.mxu0 0
  %566 = vmatpush1.bf16.msra.mxu0 %v422
  %567 = vmatprep.subr.bf16.mxu0 0
  %568 = vmatpush1.bf16.msra.mxu0 %v423
  %569 = vmatprep.subr.bf16.mxu0 0
  %570 = vmatpush1.bf16.msra.mxu0 %v424
  %571 = vmatprep.subr.bf16.mxu0 0
  %572 = vmatpush1.bf16.msra.mxu0 %v425
  %573 = vmatprep.subr.bf16.mxu0 0
  %574 = vmatpush1.bf16.msra.mxu0 %v426
  %575 = vmatprep.subr.bf16.mxu0 0
  %576 = vmatpush1.bf16.msra.mxu0 %v427
  %577 = vmatprep.subr.bf16.mxu0 0
  %578 = vmatpush1.bf16.msra.mxu0 %v428
  %579 = vmatprep.subr.bf16.mxu0 0
  %580 = vmatpush1.bf16.msra.mxu0 %v429
  %581 = vmatprep.subr.bf16.mxu0 0
  %582 = vmatpush1.bf16.msra.mxu0 %v430
  %583 = vmatprep.subr.bf16.mxu0 0
  %584 = vmatpush1.bf16.msra.mxu0 %v431
  %585 = vmatprep.mubr.bf16.mxu0 %v165
  %586 = vmatmul.mubr.bf16.gmra.mrb[0].mxu0 %v164
  %v587 = vpop.f32.mrb[0].mxu0
  %v588 = vadd.f32 %v547, %v587
  %v589 = vpop.f32.mrb[0].mxu0
  %v590 = vpop.f32.mrb[0].mxu0
  %v591 = vadd.f32 %v550, %v590
  %v592 = vpop.f32.mrb[0].mxu0
  %593 = vdwg.mxu0
  %594 = vmatprep.subr.bf16.mxu0 0
  %595 = vmatpush1.bf16.msra.mxu0 %v432
  %596 = vmatprep.subr.bf16.mxu0 0
  %597 = vmatpush1.bf16.msra.mxu0 %v433
  %598 = vmatprep.subr.bf16.mxu0 0
  %599 = vmatpush1.bf16.msra.mxu0 %v434
  %600 = vmatprep.subr.bf16.mxu0 0
  %601 = vmatpush1.bf16.msra.mxu0 %v435
  %602 = vmatprep.subr.bf16.mxu0 0
  %603 = vmatpush1.bf16.msra.mxu0 %v436
  %604 = vmatprep.subr.bf16.mxu0 0
  %605 = vmatpush1.bf16.msra.mxu0 %v437
  %606 = vmatprep.subr.bf16.mxu0 0
  %607 = vmatpush1.bf16.msra.mxu0 %v438
  %608 = vmatprep.subr.bf16.mxu0 0
  %609 = vmatpush1.bf16.msra.mxu0 %v439
  %610 = vmatprep.subr.bf16.mxu0 0
  %611 = vmatpush1.bf16.msra.mxu0 %v440
  %612 = vmatprep.subr.bf16.mxu0 0
  %613 = vmatpush1.bf16.msra.mxu0 %v441
  %614 = vmatprep.subr.bf16.mxu0 0
  %615 = vmatpush1.bf16.msra.mxu0 %v442
  %616 = vmatprep.subr.bf16.mxu0 0
  %617 = vmatpush1.bf16.msra.mxu0 %v443
  %618 = vmatprep.subr.bf16.mxu0 0
  %619 = vmatpush1.bf16.msra.mxu0 %v444
  %620 = vmatprep.subr.bf16.mxu0 0
  %621 = vmatpush1.bf16.msra.mxu0 %v445
  %622 = vmatprep.subr.bf16.mxu0 0
  %623 = vmatpush1.bf16.msra.mxu0 %v446
  %624 = vmatprep.subr.bf16.mxu0 0
  %625 = vmatpush1.bf16.msra.mxu0 %v447
  %626 = vmatprep.mubr.bf16.mxu0 %v167
  %627 = vmatmul.mubr.bf16.gmra.mrb[0].mxu0 %v166
  %v628 = vpop.f32.mrb[0].mxu0
  %v629 = vadd.f32 %v588, %v628
  %v630 = vpop.f32.mrb[0].mxu0
  %v631 = vpop.f32.mrb[0].mxu0
  %v632 = vadd.f32 %v591, %v631
  %v633 = vpop.f32.mrb[0].mxu0
  %634 = vdwg.mxu0
  %635 = vmatprep.subr.bf16.mxu0 0
  %636 = vmatpush1.bf16.msra.mxu0 %v448
  %637 = vmatprep.subr.bf16.mxu0 0
  %638 = vmatpush1.bf16.msra.mxu0 %v449
  %639 = vmatprep.subr.bf16.mxu0 0
  %640 = vmatpush1.bf16.msra.mxu0 %v450
  %641 = vmatprep.subr.bf16.mxu0 0
  %642 = vmatpush1.bf16.msra.mxu0 %v451
  %643 = vmatprep.subr.bf16.mxu0 0
  %644 = vmatpush1.bf16.msra.mxu0 %v452
  %645 = vmatprep.subr.bf16.mxu0 0
  %646 = vmatpush1.bf16.msra.mxu0 %v453
  %647 = vmatprep.subr.bf16.mxu0 0
  %648 = vmatpush1.bf16.msra.mxu0 %v454
  %649 = vmatprep.subr.bf16.mxu0 0
  %650 = vmatpush1.bf16.msra.mxu0 %v455
  %651 = vmatprep.subr.bf16.mxu0 0
  %652 = vmatpush1.bf16.msra.mxu0 0
  %653 = vmatprep.subr.bf16.mxu0 0
  %654 = vmatpush1.bf16.msra.mxu0 0
  %655 = vmatprep.subr.bf16.mxu0 0
  %656 = vmatpush1.bf16.msra.mxu0 0
  %657 = vmatprep.subr.bf16.mxu0 0
  %658 = vmatpush1.bf16.msra.mxu0 0
  %659 = vmatprep.subr.bf16.mxu0 0
  %660 = vmatpush1.bf16.msra.mxu0 0
  %661 = vmatprep.subr.bf16.mxu0 0
  %662 = vmatpush1.bf16.msra.mxu0 0
  %663 = vmatprep.subr.bf16.mxu0 0
  %664 = vmatpush1.bf16.msra.mxu0 0
  %665 = vmatprep.subr.bf16.mxu0 0
  %666 = vmatpush1.bf16.msra.mxu0 0
  %667 = vmatprep.mubr.bf16.mxu0 0
  %668 = vmatmul.mubr.bf16.gmra.mrb[0].mxu0 %v168
  %v669 = vpop.f32.mrb[0].mxu0
  %v670 = vadd.f32 %v629, %v669
  %v671 = vpop.f32.mrb[0].mxu0
  %v672 = vpop.f32.mrb[0].mxu0
  %v673 = vadd.f32 %v632, %v672
  %v674 = vpop.f32.mrb[0].mxu0
  %675 = vdwg.mxu0
  %v676 = vld [vmem:[%s2 + $0x2] sm:$0x1]
  %v677 = vld [vmem:[%s2 + $0x1] sm:$0x1]
  %v678 = vmul.f32 %v670, %v670
  %v679 = vmul.f32 %v673, %v673
  %v680 = vlaneseq
  %v681 = vshrl.u32 %v680, 7
  %v682 = vsub.s32 0, %v681
  %v683 = vrot.slane %v677, %v682
  %v684 = vmul.f32 %v683, %v678
  %v685 = vmul.f32 %v683, %v679
  %v686 = vlaneseq
  %v687 = vshrl.u32 %v686, 7
  %v688 = vsub.s32 0, %v687
  %v689 = vrot.slane %v676, %v688
  %v690 = vadd.f32 %v689, %v684
  %v691 = vadd.f32 %v689, %v685
  %v692 = vrsqrt.pop %v690
  %v693 = vrsqrt.pop %v691
  %v694 = vmul.f32 %v670, %v692
  %v695 = vmul.f32 %v673, %v693
  %v696 = vpack.c.bf16 %v695, %v694
  %v698 = vunpack.c.l.b16 %v696
  %v699 = vunpack.c.h.b16 %v696
  %v700 = vpack.c.b16 %v698, %v698
  %v701 = vpack.c.b16 %v699, %v699
  %704 = vst [vmem:[%s3] sm:$0xf] %v700
  %705 = vst [vmem:[%s3 + $0x4] sm:$0xf] %v701
  // Predicated region
  $region14: #{binary_output_encoder_forward.4} parent=0 // pred_check
    _
  $region15: #{binary_output_encoder_forward.4} parent=0 // pred_check_branch
    %707 = sbr.rel (0) target = $region17
  $region16: #{binary_output_encoder_forward.4} parent=0 // pred_region
    _
  $region17: #{binary_output_encoder_forward.4} parent=0 // pred_fallthru
    _
  // Predicated region
  $region18: #{binary_output_encoder_forward.4} parent=0 // pred_check
    _
  $region19: #{binary_output_encoder_forward.4} parent=0 // pred_check_branch
    %709 = sbr.rel (0) target = $region21
  $region20: #{binary_output_encoder_forward.4} parent=0 // pred_region
    _
  $region21: #{binary_output_encoder_forward.4} parent=0 // pred_fallthru
    _

// kernel: binary_output_encoder_forward.5
$region0: #{binary_output_encoder_forward.5}
  #allocation0 [shape = 'u32[]', space=smem, size = 0x4, offset = 0x4, fixed_abs, tag = 'smem constant byte address 0x4 - core index']
  #allocation1 [shape = 'u32[144,128]{1,0:T(1,128)}', space=vmem, size = 0x12000, scoped, tag = 'internal scratch']
  %s0 = inlined_call_operand.vmem [shape: bf16[16,896], index: 0, kind: input, shape index: {}]
  %s1 = inlined_call_operand.vmem [shape: bf16[896,128], index: 1, kind: input, shape index: {}]
  %s2 = inlined_call_operand.vmem [shape: f32[16,128], index: 2, kind: output, shape index: {}]
  %s3 = sld [smem:[#allocation0]]
  $region18: #{binary_output_encoder_forward.5} parent=0
    _
  %s5 = ssub.s32 1, %s3
  %s6 = scalar_select 0, %s5, %s3
  // Predicated region
  $region2: #{binary_output_encoder_forward.5} parent=0 // pred_check
    _
  $region3: #{binary_output_encoder_forward.5} parent=0 // pred_check_branch
    %8 = sbr.rel (0) target = $region5
  $region4: #{binary_output_encoder_forward.5} parent=0 // pred_region
    _
  $region5: #{binary_output_encoder_forward.5} parent=0 // pred_fallthru
    _
  // Predicated region
  $region6: #{binary_output_encoder_forward.5} parent=0 // pred_check
    _
  $region7: #{binary_output_encoder_forward.5} parent=0 // pred_check_branch
    %10 = sbr.rel (0) target = $region9
  $region8: #{binary_output_encoder_forward.5} parent=0 // pred_region
    _
  $region9: #{binary_output_encoder_forward.5} parent=0 // pred_fallthru
    _
  %v12 = vld [vmem:[%s0] sm:$0xff]
  %v13 = vld [vmem:[%s0 + $0x8] sm:$0xff]
  %v14 = vld [vmem:[%s0 + $0x10] sm:$0xff]
  %v15 = vld [vmem:[%s0 + $0x18] sm:$0xf]
  %v16 = vld [vmem:[%s0 + $0x1c] sm:$0xff]
  %v17 = vld [vmem:[%s0 + $0x24] sm:$0xff]
  %v18 = vld [vmem:[%s0 + $0x2c] sm:$0xff]
  %v19 = vld [vmem:[%s0 + $0x34] sm:$0xf]
  %v20 = vld [vmem:[%s1] sm:$0xf]
  %v21 = vld [vmem:[%s1 + $0x4] sm:$0xf]
  %v22 = vld [vmem:[%s1 + $0x8] sm:$0xf]
  %v23 = vld [vmem:[%s1 + $0xc] sm:$0xf]
  %v24 = vld [vmem:[%s1 + $0x10] sm:$0xf]
  %v25 = vld [vmem:[%s1 + $0x14] sm:$0xf]
  %v26 = vld [vmem:[%s1 + $0x18] sm:$0xf]
  %v27 = vld [vmem:[%s1 + $0x1c] sm:$0xf]
  %v28 = vld [vmem:[%s1 + $0x20] sm:$0xf]
  %v29 = vld [vmem:[%s1 + $0x24] sm:$0xf]
  %v30 = vld [vmem:[%s1 + $0x28] sm:$0xf]
  %v31 = vld [vmem:[%s1 + $0x2c] sm:$0xf]
  %v32 = vld [vmem:[%s1 + $0x30] sm:$0xf]
  %v33 = vld [vmem:[%s1 + $0x34] sm:$0xf]
  %v34 = vld [vmem:[%s1 + $0x38] sm:$0xf]
  %v35 = vld [vmem:[%s1 + $0x3c] sm:$0xf]
  %v36 = vld [vmem:[%s1 + $0x40] sm:$0xf]
  %v37 = vld [vmem:[%s1 + $0x44] sm:$0xf]
  %v38 = vld [vmem:[%s1 + $0x48] sm:$0xf]
  %v39 = vld [vmem:[%s1 + $0x4c] sm:$0xf]
  %v40 = vld [vmem:[%s1 + $0x50] sm:$0xf]
  %v41 = vld [vmem:[%s1 + $0x54] sm:$0xf]
  %v42 = vld [vmem:[%s1 + $0x58] sm:$0xf]
  %v43 = vld [vmem:[%s1 + $0x5c] sm:$0xf]
  %v44 = vld [vmem:[%s1 + $0x60] sm:$0xf]
  %v45 = vld [vmem:[%s1 + $0x64] sm:$0xf]
  %v46 = vld [vmem:[%s1 + $0x68] sm:$0xf]
  %v47 = vld [vmem:[%s1 + $0x6c] sm:$0xf]
  %v48 = vld [vmem:[%s1 + $0x70] sm:$0xf]
  %v49 = vld [vmem:[%s1 + $0x74] sm:$0xf]
  %v50 = vld [vmem:[%s1 + $0x78] sm:$0xf]
  %v51 = vld [vmem:[%s1 + $0x7c] sm:$0xf]
  %v52 = vld [vmem:[%s1 + $0x80] sm:$0xf]
  %v53 = vld [vmem:[%s1 + $0x84] sm:$0xf]
  %v54 = vld [vmem:[%s1 + $0x88] sm:$0xf]
  %v55 = vld [vmem:[%s1 + $0x8c] sm:$0xf]
  %v56 = vld [vmem:[%s1 + $0x90] sm:$0xf]
  %v57 = vld [vmem:[%s1 + $0x94] sm:$0xf]
  %v58 = vld [vmem:[%s1 + $0x98] sm:$0xf]
  %v59 = vld [vmem:[%s1 + $0x9c] sm:$0xf]
  %v60 = vld [vmem:[%s1 + $0xa0] sm:$0xf]
  %v61 = vld [vmem:[%s1 + $0xa4] sm:$0xf]
  %v62 = vld [vmem:[%s1 + $0xa8] sm:$0xf]
  %v63 = vld [vmem:[%s1 + $0xac] sm:$0xf]
  %v64 = vld [vmem:[%s1 + $0xb0] sm:$0xf]
  %v65 = vld [vmem:[%s1 + $0xb4] sm:$0xf]
  %v66 = vld [vmem:[%s1 + $0xb8] sm:$0xf]
  %v67 = vld [vmem:[%s1 + $0xbc] sm:$0xf]
  %v68 = vld [vmem:[%s1 + $0xc0] sm:$0xf]
  %v69 = vld [vmem:[%s1 + $0xc4] sm:$0xf]
  %v70 = vld [vmem:[%s1 + $0xc8] sm:$0xf]
  %v71 = vld [vmem:[%s1 + $0xcc] sm:$0xf]
  %v72 = vld [vmem:[%s1 + $0xd0] sm:$0xf]
  %v73 = vld [vmem:[%s1 + $0xd4] sm:$0xf]
  %v74 = vld [vmem:[%s1 + $0xd8] sm:$0xf]
  %v75 = vld [vmem:[%s1 + $0xdc] sm:$0xf]
  %v76 = vld [vmem:[%s1 + $0xe0] sm:$0xf]
  %v77 = vld [vmem:[%s1 + $0xe4] sm:$0xf]
  %v78 = vld [vmem:[%s1 + $0xe8] sm:$0xf]
  %v79 = vld [vmem:[%s1 + $0xec] sm:$0xf]
  %v80 = vld [vmem:[%s1 + $0xf0] sm:$0xf]
  %v81 = vld [vmem:[%s1 + $0xf4] sm:$0xf]
  %v82 = vld [vmem:[%s1 + $0xf8] sm:$0xf]
  %v83 = vld [vmem:[%s1 + $0xfc] sm:$0xf]
  %v84 = vld [vmem:[%s1 + $0x100] sm:$0xf]
  %v85 = vld [vmem:[%s1 + $0x104] sm:$0xf]
  %v86 = vld [vmem:[%s1 + $0x108] sm:$0xf]
  %v87 = vld [vmem:[%s1 + $0x10c] sm:$0xf]
  %v88 = vld [vmem:[%s1 + $0x110] sm:$0xf]
  %v89 = vld [vmem:[%s1 + $0x114] sm:$0xf]
  %v90 = vld [vmem:[%s1 + $0x118] sm:$0xf]
  %v91 = vld [vmem:[%s1 + $0x11c] sm:$0xf]
  %v92 = vld [vmem:[%s1 + $0x120] sm:$0xf]
  %v93 = vld [vmem:[%s1 + $0x124] sm:$0xf]
  %v94 = vld [vmem:[%s1 + $0x128] sm:$0xf]
  %v95 = vld [vmem:[%s1 + $0x12c] sm:$0xf]
  %v96 = vld [vmem:[%s1 + $0x130] sm:$0xf]
  %v97 = vld [vmem:[%s1 + $0x134] sm:$0xf]
  %v98 = vld [vmem:[%s1 + $0x138] sm:$0xf]
  %v99 = vld [vmem:[%s1 + $0x13c] sm:$0xf]
  %v100 = vld [vmem:[%s1 + $0x140] sm:$0xf]
  %v101 = vld [vmem:[%s1 + $0x144] sm:$0xf]
  %v102 = vld [vmem:[%s1 + $0x148] sm:$0xf]
  %v103 = vld [vmem:[%s1 + $0x14c] sm:$0xf]
  %v104 = vld [vmem:[%s1 + $0x150] sm:$0xf]
  %v105 = vld [vmem:[%s1 + $0x154] sm:$0xf]
  %v106 = vld [vmem:[%s1 + $0x158] sm:$0xf]
  %v107 = vld [vmem:[%s1 + $0x15c] sm:$0xf]
  %v108 = vld [vmem:[%s1 + $0x160] sm:$0xf]
  %v109 = vld [vmem:[%s1 + $0x164] sm:$0xf]
  %v110 = vld [vmem:[%s1 + $0x168] sm:$0xf]
  %v111 = vld [vmem:[%s1 + $0x16c] sm:$0xf]
  %v112 = vld [vmem:[%s1 + $0x170] sm:$0xf]
  %v113 = vld [vmem:[%s1 + $0x174] sm:$0xf]
  %v114 = vld [vmem:[%s1 + $0x178] sm:$0xf]
  %v115 = vld [vmem:[%s1 + $0x17c] sm:$0xf]
  %v116 = vld [vmem:[%s1 + $0x180] sm:$0xf]
  %v117 = vld [vmem:[%s1 + $0x184] sm:$0xf]
  %v118 = vld [vmem:[%s1 + $0x188] sm:$0xf]
  %v119 = vld [vmem:[%s1 + $0x18c] sm:$0xf]
  %v120 = vld [vmem:[%s1 + $0x190] sm:$0xf]
  %v121 = vld [vmem:[%s1 + $0x194] sm:$0xf]
  %v122 = vld [vmem:[%s1 + $0x198] sm:$0xf]
  %v123 = vld [vmem:[%s1 + $0x19c] sm:$0xf]
  %v124 = vld [vmem:[%s1 + $0x1a0] sm:$0xf]
  %v125 = vld [vmem:[%s1 + $0x1a4] sm:$0xf]
  %v126 = vld [vmem:[%s1 + $0x1a8] sm:$0xf]
  %v127 = vld [vmem:[%s1 + $0x1ac] sm:$0xf]
  %v128 = vld [vmem:[%s1 + $0x1b0] sm:$0xf]
  %v129 = vld [vmem:[%s1 + $0x1b4] sm:$0xf]
  %v130 = vld [vmem:[%s1 + $0x1b8] sm:$0xf]
  %v131 = vld [vmem:[%s1 + $0x1bc] sm:$0xf]
  %v140 = vunpack.c.l.b16 %v12
  %v141 = vunpack.c.h.b16 %v12
  %v142 = vunpack.c.l.b16 %v13
  %v143 = vunpack.c.h.b16 %v13
  %v144 = vunpack.c.l.b16 %v14
  %v145 = vunpack.c.h.b16 %v14
  %v146 = vunpack.c.l.b16 %v15
  %v147 = vunpack.c.l.b16 %v16
  %v148 = vunpack.c.h.b16 %v16
  %v149 = vunpack.c.l.b16 %v17
  %v150 = vunpack.c.h.b16 %v17
  %v151 = vunpack.c.l.b16 %v18
  %v152 = vunpack.c.h.b16 %v18
  %v153 = vunpack.c.l.b16 %v19
  %v154 = vpack.c.b16 %v147, %v140
  %v155 = vpack.c.b16 %v148, %v141
  %v156 = vpack.c.b16 %v149, %v142
  %v157 = vpack.c.b16 %v150, %v143
  %v158 = vpack.c.b16 %v151, %v144
  %v159 = vpack.c.b16 %v152, %v145
  %v160 = vpack.c.b16 %v153, %v146
  %v280 = vunpack.c.l.b16 %v20
  %v281 = vunpack.c.l.b16 %v21
  %v282 = vunpack.c.l.b16 %v22
  %v283 = vunpack.c.l.b16 %v23
  %v284 = vunpack.c.l.b16 %v24
  %v285 = vunpack.c.l.b16 %v25
  %v286 = vunpack.c.l.b16 %v26
  %v287 = vunpack.c.l.b16 %v27
  %v288 = vunpack.c.l.b16 %v28
  %v289 = vunpack.c.l.b16 %v29
  %v290 = vunpack.c.l.b16 %v30
  %v291 = vunpack.c.l.b16 %v31
  %v292 = vunpack.c.l.b16 %v32
  %v293 = vunpack.c.l.b16 %v33
  %v294 = vunpack.c.l.b16 %v34
  %v295 = vunpack.c.l.b16 %v35
  %v296 = vunpack.c.l.b16 %v36
  %v297 = vunpack.c.l.b16 %v37
  %v298 = vunpack.c.l.b16 %v38
  %v299 = vunpack.c.l.b16 %v39
  %v300 = vunpack.c.l.b16 %v40
  %v301 = vunpack.c.l.b16 %v41
  %v302 = vunpack.c.l.b16 %v42
  %v303 = vunpack.c.l.b16 %v43
  %v304 = vunpack.c.l.b16 %v44
  %v305 = vunpack.c.l.b16 %v45
  %v306 = vunpack.c.l.b16 %v46
  %v307 = vunpack.c.l.b16 %v47
  %v308 = vunpack.c.l.b16 %v48
  %v309 = vunpack.c.l.b16 %v49
  %v310 = vunpack.c.l.b16 %v50
  %v311 = vunpack.c.l.b16 %v51
  %v312 = vunpack.c.l.b16 %v52
  %v313 = vunpack.c.l.b16 %v53
  %v314 = vunpack.c.l.b16 %v54
  %v315 = vunpack.c.l.b16 %v55
  %v316 = vunpack.c.l.b16 %v56
  %v317 = vunpack.c.l.b16 %v57
  %v318 = vunpack.c.l.b16 %v58
  %v319 = vunpack.c.l.b16 %v59
  %v320 = vunpack.c.l.b16 %v60
  %v321 = vunpack.c.l.b16 %v61
  %v322 = vunpack.c.l.b16 %v62
  %v323 = vunpack.c.l.b16 %v63
  %v324 = vunpack.c.l.b16 %v64
  %v325 = vunpack.c.l.b16 %v65
  %v326 = vunpack.c.l.b16 %v66
  %v327 = vunpack.c.l.b16 %v67
  %v328 = vunpack.c.l.b16 %v68
  %v329 = vunpack.c.l.b16 %v69
  %v330 = vunpack.c.l.b16 %v70
  %v331 = vunpack.c.l.b16 %v71
  %v332 = vunpack.c.l.b16 %v72
  %v333 = vunpack.c.l.b16 %v73
  %v334 = vunpack.c.l.b16 %v74
  %v335 = vunpack.c.l.b16 %v75
  %v336 = vunpack.c.l.b16 %v76
  %v337 = vunpack.c.l.b16 %v77
  %v338 = vunpack.c.l.b16 %v78
  %v339 = vunpack.c.l.b16 %v79
  %v340 = vunpack.c.l.b16 %v80
  %v341 = vunpack.c.l.b16 %v81
  %v342 = vunpack.c.l.b16 %v82
  %v343 = vunpack.c.l.b16 %v83
  %v344 = vunpack.c.l.b16 %v84
  %v345 = vunpack.c.l.b16 %v85
  %v346 = vunpack.c.l.b16 %v86
  %v347 = vunpack.c.l.b16 %v87
  %v348 = vunpack.c.l.b16 %v88
  %v349 = vunpack.c.l.b16 %v89
  %v350 = vunpack.c.l.b16 %v90
  %v351 = vunpack.c.l.b16 %v91
  %v352 = vunpack.c.l.b16 %v92
  %v353 = vunpack.c.l.b16 %v93
  %v354 = vunpack.c.l.b16 %v94
  %v355 = vunpack.c.l.b16 %v95
  %v356 = vunpack.c.l.b16 %v96
  %v357 = vunpack.c.l.b16 %v97
  %v358 = vunpack.c.l.b16 %v98
  %v359 = vunpack.c.l.b16 %v99
  %v360 = vunpack.c.l.b16 %v100
  %v361 = vunpack.c.l.b16 %v101
  %v362 = vunpack.c.l.b16 %v102
  %v363 = vunpack.c.l.b16 %v103
  %v364 = vunpack.c.l.b16 %v104
  %v365 = vunpack.c.l.b16 %v105
  %v366 = vunpack.c.l.b16 %v106
  %v367 = vunpack.c.l.b16 %v107
  %v368 = vunpack.c.l.b16 %v108
  %v369 = vunpack.c.l.b16 %v109
  %v370 = vunpack.c.l.b16 %v110
  %v371 = vunpack.c.l.b16 %v111
  %v372 = vunpack.c.l.b16 %v112
  %v373 = vunpack.c.l.b16 %v113
  %v374 = vunpack.c.l.b16 %v114
  %v375 = vunpack.c.l.b16 %v115
  %v376 = vunpack.c.l.b16 %v116
  %v377 = vunpack.c.l.b16 %v117
  %v378 = vunpack.c.l.b16 %v118
  %v379 = vunpack.c.l.b16 %v119
  %v380 = vunpack.c.l.b16 %v120
  %v381 = vunpack.c.l.b16 %v121
  %v382 = vunpack.c.l.b16 %v122
  %v383 = vunpack.c.l.b16 %v123
  %v384 = vunpack.c.l.b16 %v124
  %v385 = vunpack.c.l.b16 %v125
  %v386 = vunpack.c.l.b16 %v126
  %v387 = vunpack.c.l.b16 %v127
  %v388 = vunpack.c.l.b16 %v128
  %v389 = vunpack.c.l.b16 %v129
  %v390 = vunpack.c.l.b16 %v130
  %v391 = vunpack.c.l.b16 %v131
  %v392 = vpack.c.b16 %v281, %v280
  %v393 = vpack.c.b16 %v283, %v282
  %v394 = vpack.c.b16 %v285, %v284
  %v395 = vpack.c.b16 %v287, %v286
  %v396 = vpack.c.b16 %v289, %v288
  %v397 = vpack.c.b16 %v291, %v290
  %v398 = vpack.c.b16 %v293, %v292
  %v399 = vpack.c.b16 %v295, %v294
  %v400 = vpack.c.b16 %v297, %v296
  %v401 = vpack.c.b16 %v299, %v298
  %v402 = vpack.c.b16 %v301, %v300
  %v403 = vpack.c.b16 %v303, %v302
  %v404 = vpack.c.b16 %v305, %v304
  %v405 = vpack.c.b16 %v307, %v306
  %v406 = vpack.c.b16 %v309, %v308
  %v407 = vpack.c.b16 %v311, %v310
  %v408 = vpack.c.b16 %v313, %v312
  %v409 = vpack.c.b16 %v315, %v314
  %v410 = vpack.c.b16 %v317, %v316
  %v411 = vpack.c.b16 %v319, %v318
  %v412 = vpack.c.b16 %v321, %v320
  %v413 = vpack.c.b16 %v323, %v322
  %v414 = vpack.c.b16 %v325, %v324
  %v415 = vpack.c.b16 %v327, %v326
  %v416 = vpack.c.b16 %v329, %v328
  %v417 = vpack.c.b16 %v331, %v330
  %v418 = vpack.c.b16 %v333, %v332
  %v419 = vpack.c.b16 %v335, %v334
  %v420 = vpack.c.b16 %v337, %v336
  %v421 = vpack.c.b16 %v339, %v338
  %v422 = vpack.c.b16 %v341, %v340
  %v423 = vpack.c.b16 %v343, %v342
  %v424 = vpack.c.b16 %v345, %v344
  %v425 = vpack.c.b16 %v347, %v346
  %v426 = vpack.c.b16 %v349, %v348
  %v427 = vpack.c.b16 %v351, %v350
  %v428 = vpack.c.b16 %v353, %v352
  %v429 = vpack.c.b16 %v355, %v354
  %v430 = vpack.c.b16 %v357, %v356
  %v431 = vpack.c.b16 %v359, %v358
  %v432 = vpack.c.b16 %v361, %v360
  %v433 = vpack.c.b16 %v363, %v362
  %v434 = vpack.c.b16 %v365, %v364
  %v435 = vpack.c.b16 %v367, %v366
  %v436 = vpack.c.b16 %v369, %v368
  %v437 = vpack.c.b16 %v371, %v370
  %v438 = vpack.c.b16 %v373, %v372
  %v439 = vpack.c.b16 %v375, %v374
  %v440 = vpack.c.b16 %v377, %v376
  %v441 = vpack.c.b16 %v379, %v378
  %v442 = vpack.c.b16 %v381, %v380
  %v443 = vpack.c.b16 %v383, %v382
  %v444 = vpack.c.b16 %v385, %v384
  %v445 = vpack.c.b16 %v387, %v386
  %v446 = vpack.c.b16 %v389, %v388
  %v447 = vpack.c.b16 %v391, %v390
  %504 = vmatprep.subr.bf16.mxu0 0
  %505 = vmatpush1.bf16.msra.mxu0 %v392
  %506 = vmatprep.subr.bf16.mxu0 0
  %507 = vmatpush1.bf16.msra.mxu0 %v393
  %508 = vmatprep.subr.bf16.mxu0 0
  %509 = vmatpush1.bf16.msra.mxu0 %v394
  %510 = vmatprep.subr.bf16.mxu0 0
  %511 = vmatpush1.bf16.msra.mxu0 %v395
  %512 = vmatprep.subr.bf16.mxu0 0
  %513 = vmatpush1.bf16.msra.mxu0 %v396
  %514 = vmatprep.subr.bf16.mxu0 0
  %515 = vmatpush1.bf16.msra.mxu0 %v397
  %516 = vmatprep.subr.bf16.mxu0 0
  %517 = vmatpush1.bf16.msra.mxu0 %v398
  %518 = vmatprep.subr.bf16.mxu0 0
  %519 = vmatpush1.bf16.msra.mxu0 %v399
  %520 = vmatprep.subr.bf16.mxu0 0
  %521 = vmatpush1.bf16.msra.mxu0 %v400
  %522 = vmatprep.subr.bf16.mxu0 0
  %523 = vmatpush1.bf16.msra.mxu0 %v401
  %524 = vmatprep.subr.bf16.mxu0 0
  %525 = vmatpush1.bf16.msra.mxu0 %v402
  %526 = vmatprep.subr.bf16.mxu0 0
  %527 = vmatpush1.bf16.msra.mxu0 %v403
  %528 = vmatprep.subr.bf16.mxu0 0
  %529 = vmatpush1.bf16.msra.mxu0 %v404
  %530 = vmatprep.subr.bf16.mxu0 0
  %531 = vmatpush1.bf16.msra.mxu0 %v405
  %532 = vmatprep.subr.bf16.mxu0 0
  %533 = vmatpush1.bf16.msra.mxu0 %v406
  %534 = vmatprep.subr.bf16.mxu0 0
  %535 = vmatpush1.bf16.msra.mxu0 %v407
  %536 = vmatprep.mubr.bf16.mxu0 %v155
  %537 = vmatmul.mubr.bf16.gmra.mrb[0].mxu0 %v154
  %v538 = vpop.f32.mrb[0].mxu0
  %v539 = vadd.f32 0.0, %v538
  %v540 = vpop.f32.mrb[0].mxu0
  %v541 = vpop.f32.mrb[0].mxu0
  %v542 = vadd.f32 0.0, %v541
  %v543 = vpop.f32.mrb[0].mxu0
  %544 = vdwg.mxu0
  %545 = vmatprep.subr.bf16.mxu0 0
  %546 = vmatpush1.bf16.msra.mxu0 %v408
  %547 = vmatprep.subr.bf16.mxu0 0
  %548 = vmatpush1.bf16.msra.mxu0 %v409
  %549 = vmatprep.subr.bf16.mxu0 0
  %550 = vmatpush1.bf16.msra.mxu0 %v410
  %551 = vmatprep.subr.bf16.mxu0 0
  %552 = vmatpush1.bf16.msra.mxu0 %v411
  %553 = vmatprep.subr.bf16.mxu0 0
  %554 = vmatpush1.bf16.msra.mxu0 %v412
  %555 = vmatprep.subr.bf16.mxu0 0
  %556 = vmatpush1.bf16.msra.mxu0 %v413
  %557 = vmatprep.subr.bf16.mxu0 0
  %558 = vmatpush1.bf16.msra.mxu0 %v414
  %559 = vmatprep.subr.bf16.mxu0 0
  %560 = vmatpush1.bf16.msra.mxu0 %v415
  %561 = vmatprep.subr.bf16.mxu0 0
  %562 = vmatpush1.bf16.msra.mxu0 %v416
  %563 = vmatprep.subr.bf16.mxu0 0
  %564 = vmatpush1.bf16.msra.mxu0 %v417
  %565 = vmatprep.subr.bf16.mxu0 0
  %566 = vmatpush1.bf16.msra.mxu0 %v418
  %567 = vmatprep.subr.bf16.mxu0 0
  %568 = vmatpush1.bf16.msra.mxu0 %v419
  %569 = vmatprep.subr.bf16.mxu0 0
  %570 = vmatpush1.bf16.msra.mxu0 %v420
  %571 = vmatprep.subr.bf16.mxu0 0
  %572 = vmatpush1.bf16.msra.mxu0 %v421
  %573 = vmatprep.subr.bf16.mxu0 0
  %574 = vmatpush1.bf16.msra.mxu0 %v422
  %575 = vmatprep.subr.bf16.mxu0 0
  %576 = vmatpush1.bf16.msra.mxu0 %v423
  %577 = vmatprep.mubr.bf16.mxu0 %v157
  %578 = vmatmul.mubr.bf16.gmra.mrb[0].mxu0 %v156
  %v579 = vpop.f32.mrb[0].mxu0
  %v580 = vadd.f32 %v539, %v579
  %v581 = vpop.f32.mrb[0].mxu0
  %v582 = vpop.f32.mrb[0].mxu0
  %v583 = vadd.f32 %v542, %v582
  %v584 = vpop.f32.mrb[0].mxu0
  %585 = vdwg.mxu0
  %586 = vmatprep.subr.bf16.mxu0 0
  %587 = vmatpush1.bf16.msra.mxu0 %v424
  %588 = vmatprep.subr.bf16.mxu0 0
  %589 = vmatpush1.bf16.msra.mxu0 %v425
  %590 = vmatprep.subr.bf16.mxu0 0
  %591 = vmatpush1.bf16.msra.mxu0 %v426
  %592 = vmatprep.subr.bf16.mxu0 0
  %593 = vmatpush1.bf16.msra.mxu0 %v427
  %594 = vmatprep.subr.bf16.mxu0 0
  %595 = vmatpush1.bf16.msra.mxu0 %v428
  %596 = vmatprep.subr.bf16.mxu0 0
  %597 = vmatpush1.bf16.msra.mxu0 %v429
  %598 = vmatprep.subr.bf16.mxu0 0
  %599 = vmatpush1.bf16.msra.mxu0 %v430
  %600 = vmatprep.subr.bf16.mxu0 0
  %601 = vmatpush1.bf16.msra.mxu0 %v431
  %602 = vmatprep.subr.bf16.mxu0 0
  %603 = vmatpush1.bf16.msra.mxu0 %v432
  %604 = vmatprep.subr.bf16.mxu0 0
  %605 = vmatpush1.bf16.msra.mxu0 %v433
  %606 = vmatprep.subr.bf16.mxu0 0
  %607 = vmatpush1.bf16.msra.mxu0 %v434
  %608 = vmatprep.subr.bf16.mxu0 0
  %609 = vmatpush1.bf16.msra.mxu0 %v435
  %610 = vmatprep.subr.bf16.mxu0 0
  %611 = vmatpush1.bf16.msra.mxu0 %v436
  %612 = vmatprep.subr.bf16.mxu0 0
  %613 = vmatpush1.bf16.msra.mxu0 %v437
  %614 = vmatprep.subr.bf16.mxu0 0
  %615 = vmatpush1.bf16.msra.mxu0 %v438
  %616 = vmatprep.subr.bf16.mxu0 0
  %617 = vmatpush1.bf16.msra.mxu0 %v439
  %618 = vmatprep.mubr.bf16.mxu0 %v159
  %619 = vmatmul.mubr.bf16.gmra.mrb[0].mxu0 %v158
  %v620 = vpop.f32.mrb[0].mxu0
  %v621 = vadd.f32 %v580, %v620
  %v622 = vpop.f32.mrb[0].mxu0
  %v623 = vpop.f32.mrb[0].mxu0
  %v624 = vadd.f32 %v583, %v623
  %v625 = vpop.f32.mrb[0].mxu0
  %626 = vdwg.mxu0
  %627 = vmatprep.subr.bf16.mxu0 0
  %628 = vmatpush1.bf16.msra.mxu0 %v440
  %629 = vmatprep.subr.bf16.mxu0 0
  %630 = vmatpush1.bf16.msra.mxu0 %v441
  %631 = vmatprep.subr.bf16.mxu0 0
  %632 = vmatpush1.bf16.msra.mxu0 %v442
  %633 = vmatprep.subr.bf16.mxu0 0
  %634 = vmatpush1.bf16.msra.mxu0 %v443
  %635 = vmatprep.subr.bf16.mxu0 0
  %636 = vmatpush1.bf16.msra.mxu0 %v444
  %637 = vmatprep.subr.bf16.mxu0 0
  %638 = vmatpush1.bf16.msra.mxu0 %v445
  %639 = vmatprep.subr.bf16.mxu0 0
  %640 = vmatpush1.bf16.msra.mxu0 %v446
  %641 = vmatprep.subr.bf16.mxu0 0
  %642 = vmatpush1.bf16.msra.mxu0 %v447
  %643 = vmatprep.subr.bf16.mxu0 0
  %644 = vmatpush1.bf16.msra.mxu0 0
  %645 = vmatprep.subr.bf16.mxu0 0
  %646 = vmatpush1.bf16.msra.mxu0 0
  %647 = vmatprep.subr.bf16.mxu0 0
  %648 = vmatpush1.bf16.msra.mxu0 0
  %649 = vmatprep.subr.bf16.mxu0 0
  %650 = vmatpush1.bf16.msra.mxu0 0
  %651 = vmatprep.subr.bf16.mxu0 0
  %652 = vmatpush1.bf16.msra.mxu0 0
  %653 = vmatprep.subr.bf16.mxu0 0
  %654 = vmatpush1.bf16.msra.mxu0 0
  %655 = vmatprep.subr.bf16.mxu0 0
  %656 = vmatpush1.bf16.msra.mxu0 0
  %657 = vmatprep.subr.bf16.mxu0 0
  %658 = vmatpush1.bf16.msra.mxu0 0
  %659 = vmatprep.mubr.bf16.mxu0 0
  %660 = vmatmul.mubr.bf16.gmra.mrb[0].mxu0 %v160
  %v661 = vpop.f32.mrb[0].mxu0
  %v662 = vadd.f32 %v621, %v661
  %v663 = vpop.f32.mrb[0].mxu0
  %v664 = vpop.f32.mrb[0].mxu0
  %v665 = vadd.f32 %v624, %v664
  %v666 = vpop.f32.mrb[0].mxu0
  %667 = vdwg.mxu0
  %668 = vst [vmem:[%s2] sm:$0xff] %v662
  %669 = vst [vmem:[%s2 + $0x8] sm:$0xff] %v665
  // Predicated region
  $region10: #{binary_output_encoder_forward.5} parent=0 // pred_check
    _
  $region11: #{binary_output_encoder_forward.5} parent=0 // pred_check_branch
    %671 = sbr.rel (0) target = $region13
  $region12: #{binary_output_encoder_forward.5} parent=0 // pred_region
    _
  $region13: #{binary_output_encoder_forward.5} parent=0 // pred_fallthru
    _
  // Predicated region
  $region14: #{binary_output_encoder_forward.5} parent=0 // pred_check
    _
  $region15: #{binary_output_encoder_forward.5} parent=0 // pred_check_branch
    %673 = sbr.rel (0) target = $region17
  $region16: #{binary_output_encoder_forward.5} parent=0 // pred_region
    _
  $region17: #{binary_output_encoder_forward.5} parent=0 // pred_fallthru
    _

</llo_original>
